<compile_context>
chip_gen: v6e
topology: v6e:2x2x1
jax: 0.10.0
libtpu: 0.0.40
codegen_flags: <defaults>
</compile_context>

<pallas_src>
import functools
import math

import numpy as np
import jax
import jax.numpy as jnp
from jax.experimental import pallas as pl
from jax.experimental.pallas import tpu as pltpu

GAUSSIAN_SCALER = 1.0 / math.sqrt(2.0 * math.pi)
HALF_LOG_2PI = 0.5 * math.log(2.0 * math.pi)
_SOFTPLUS_CUTOFF = 20.0  # log(1+exp(x)) == x to f32 precision above this


class Hyper:
    """Deterministic stand-in for the `hyper` config object used by BBBLayer."""
    s1 = 1.0
    s2 = 0.0009
    pi = 0.5
    rho_init = -3.0
    mixture = True


def _round_up(x, m):
    return ((x + m - 1) // m) * m


def _softplus(x):
    # torch writes log(1 + exp(x)); guard the exp overflow for large x (identical otherwise).
    return jnp.where(x > _SOFTPLUS_CUTOFF, x, jnp.log(1.0 + jnp.exp(x)))


# --------------------------------------------------------------------------------------
# Training-path kernel: sampled linear + log q(w|theta) + log p(w)
# --------------------------------------------------------------------------------------
def _bbb_kernel(data_ref, wmu_ref, wrho_ref, epsw_ref, bmu_ref, brho_ref, epsb_ref,
                out_ref, lqw_ref, lpw_ref,
                acc_ref, lq_acc_ref, lp_acc_ref,
                *, c_narrow, c_wide, a_narrow, a_wide, mixture,
                log_norm_single, a_single, matmul_dtype):
    k = pl.program_id(1)              # reduction (n_input) tile index — innermost axis
    nk = pl.num_programs(1)

    @pl.when(k == 0)
    def _init():
        acc_ref[...] = jnp.zeros_like(acc_ref)
        lq_acc_ref[...] = jnp.zeros_like(lq_acc_ref)
        lp_acc_ref[...] = jnp.zeros_like(lp_acc_ref)

    wmu = wmu_ref[...]                # (TK, TN), already transposed to (n_input, n_output)
    wrho = wrho_ref[...]

    # Reparameterized sample: W = mu + softplus(rho) * eps   (1 exp + 1 log per element).
    sp = _softplus(wrho)
    delta = sp * epsw_ref[...]        # == W - mu, reused for the posterior quadratic term
    w = wmu + delta

    # MXU: out += data @ W   (standard (B,K)@(K,N) contraction, no transpose needed).
    acc_ref[...] += jnp.dot(data_ref[...].astype(matmul_dtype),
                            w.astype(matmul_dtype),
                            preferred_element_type=jnp.float32)

    # log q(w|theta) = -0.5*log(2pi) - rho - (w-mu)^2 * 0.5*exp(-2*rho)   (1 exp, no divide)
    lq = (-HALF_LOG_2PI) - wrho - (delta * delta) * (0.5 * jnp.exp(-2.0 * wrho))
    lq_acc_ref[...] += lq             # cheap elementwise VPU accumulation (no per-tile reduce)

    # log p(w): scale-mixture prior (constants folded) or single gaussian.
    w2 = w * w
    if mixture:
        lp = jnp.log(c_narrow * jnp.exp(-w2 * a_narrow) + c_wide * jnp.exp(-w2 * a_wide))
    else:
        lp = log_norm_single - w2 * a_single
    lp_acc_ref[...] += lp

    @pl.when(k == nk - 1)
    def _finalize():
        # Bias math done once per output tile (not once per reduction step).
        bmu = bmu_ref[...]
        brho = brho_ref[...]
        spb = _softplus(brho)
        db = spb * epsb_ref[...]
        b = bmu + db

        out_ref[...] = (acc_ref[...] + b).astype(out_ref.dtype)

        lq_b = (-HALF_LOG_2PI) - brho - (db * db) * (0.5 * jnp.exp(-2.0 * brho))
        b2 = b * b
        if mixture:
            lp_b = jnp.log(c_narrow * jnp.exp(-b2 * a_narrow) + c_wide * jnp.exp(-b2 * a_wide))
        else:
            lp_b = log_norm_single - b2 * a_single

        # Single cross-lane/sublane reduce per output tile; broadcast into the
        # lane-dense (1,128) partial-sum output block (lane 0 is read by the wrapper).
        lqw_tile = jnp.sum(lq_acc_ref[...]) + jnp.sum(lq_b)
        lpw_tile = jnp.sum(lp_acc_ref[...]) + jnp.sum(lp_b)
        lqw_ref[...] = lqw_tile + jnp.zeros(lqw_ref.shape, jnp.float32)
        lpw_ref[...] = lpw_tile + jnp.zeros(lpw_ref.shape, jnp.float32)


# --------------------------------------------------------------------------------------
# Inference-path kernel: plain data @ weight_mu.T + bias_mu (no noise, no KL terms).
# --------------------------------------------------------------------------------------
def _linear_kernel(data_ref, wmu_ref, bmu_ref, out_ref, acc_ref):
    k = pl.program_id(1)

    @pl.when(k == 0)
    def _init():
        acc_ref[...] = jnp.zeros_like(acc_ref)

    acc_ref[...] += jnp.dot(data_ref[...], wmu_ref[...],
                            preferred_element_type=jnp.float32)

    @pl.when(k == pl.num_programs(1) - 1)
    def _fin():
        out_ref[...] = (acc_ref[...] + bmu_ref[...]).astype(out_ref.dtype)


# --------------------------------------------------------------------------------------
# Wrapper
# --------------------------------------------------------------------------------------
def bbb_forward(data, weight_mu, weight_rho, bias_mu, bias_rho, eps_W, eps_b,
                hyper=Hyper, infer=False, matmul_dtype=jnp.float32,
                block_n=512, block_k=512):
    """Training: returns (output, lqw, lpw). Inference (infer=True): returns output only."""
    data = jnp.asarray(data, jnp.float32)
    B, n_input = data.shape
    n_output = weight_mu.shape[0]

    # --- layout plumbing: transpose weight-side tensors to (n_input, n_output) and pad ---
    bp = _round_up(B, 8)                                   # sublane-aligned batch
    tn = min(block_n, _round_up(n_output, 128))            # lane-dense output tile
    tk = min(block_k, _round_up(n_input, 128))             # reduction tile
    op = _round_up(n_output, tn)
    ip = _round_up(n_input, tk)
    n_j, n_k = op // tn, ip // tk

    def pad2(x, r, c):
        x = jnp.asarray(x, jnp.float32)
        return jnp.pad(x, ((0, r - x.shape[0]), (0, c - x.shape[1])))

    def pad_row(x, c):
        x = jnp.asarray(x, jnp.float32)
        return jnp.pad(x, (0, c - x.shape[0])).reshape(1, c)

    data_p = pad2(data, bp, ip)
    wmu_t = pad2(weight_mu.T, ip, op)
    bmu_p = pad_row(bias_mu, op)

    grid = (n_j, n_k)                                      # reduction axis last
    d_spec = pl.BlockSpec((bp, tk), lambda j, k: (0, k))
    w_spec = pl.BlockSpec((tk, tn), lambda j, k: (k, j))
    b_spec = pl.BlockSpec((1, tn), lambda j, k: (0, j))
    o_spec = pl.BlockSpec((bp, tn), lambda j, k: (0, j))   # resident across the k axis
    s_spec = pl.BlockSpec((1, 128), lambda j, k: (0, j))   # per-output-tile lqw/lpw partials

    # VMEM budget: double-buffered blocks + persistent scratch, with headroom.
    blk_bytes = 4 * (bp * tk + 3 * tk * tn + 3 * tn + bp * tn + 2 * 128)
    scr_bytes = 4 * (bp * tn + 2 * tk * tn)
    vmem_limit = int(min(100 * 2 ** 20, max(32 * 2 ** 20, 1.5 * (2 * blk_bytes + scr_bytes))))
    cparams = pltpu.CompilerParams(
        dimension_semantics=("parallel", "arbitrary"),     # O axis shards across v7x's 2 TCs
        vmem_limit_bytes=vmem_limit)

    if infer:
        out_p = pl.pallas_call(
            _linear_kernel,
            out_shape=jax.ShapeDtypeStruct((bp, op), jnp.float32),
            grid=grid,
            in_specs=[d_spec, w_spec, b_spec],
            out_specs=o_spec,
            scratch_shapes=[pltpu.VMEM((bp, tn), jnp.float32)],
            compiler_params=cparams,
        )(data_p, wmu_t, bmu_p)
        return out_p[:B, :n_output]

    wrho_t = pad2(weight_rho.T, ip, op)
    epsw_t = pad2(eps_W.T, ip, op)
    brho_p = pad_row(bias_rho, op)
    epsb_p = pad_row(eps_b, op)

    s1, s2 = float(hyper.s1), float(hyper.s2)
    pi, mixture = float(hyper.pi), bool(hyper.mixture)
    # Folded prior constants (mixture_prior is called as (W, pi, s2, s1) in the reference).
    c_narrow = pi * GAUSSIAN_SCALER / s2
    c_wide = (1.0 - pi) * GAUSSIAN_SCALER / s1
    a_narrow = 1.0 / (2.0 * s2 * s2)
    a_wide = 1.0 / (2.0 * s1 * s1)
    log_norm_single = -HALF_LOG_2PI - math.log(abs(s1))
    a_single = 1.0 / (2.0 * s1 * s1)

    kern = functools.partial(
        _bbb_kernel, c_narrow=c_narrow, c_wide=c_wide, a_narrow=a_narrow, a_wide=a_wide,
        mixture=mixture, log_norm_single=log_norm_single, a_single=a_single,
        matmul_dtype=matmul_dtype)

    out_p, lqw_parts, lpw_parts = pl.pallas_call(
        kern,
        out_shape=(
            jax.ShapeDtypeStruct((bp, op), jnp.float32),
            jax.ShapeDtypeStruct((1, n_j * 128), jnp.float32),
            jax.ShapeDtypeStruct((1, n_j * 128), jnp.float32),
        ),
        grid=grid,
        in_specs=[d_spec, w_spec, w_spec, w_spec, b_spec, b_spec, b_spec],
        out_specs=(o_spec, s_spec, s_spec),
        scratch_shapes=[
            pltpu.VMEM((bp, tn), jnp.float32),   # matmul accumulator
            pltpu.VMEM((tk, tn), jnp.float32),   # lqw elementwise accumulator
            pltpu.VMEM((tk, tn), jnp.float32),   # lpw elementwise accumulator
        ],
        compiler_params=cparams,
    )(data_p, wmu_t, wrho_t, epsw_t, bmu_p, brho_p, epsb_p)

    lqw = jnp.sum(lqw_parts[0, ::128])
    lpw = jnp.sum(lpw_parts[0, ::128])

    # Remove the closed-form contribution of zero-padded entries (mu = rho = eps = 0 => w = 0).
    n_pad = (ip * op - n_input * n_output) + (op - n_output)
    if n_pad:
        pad_lq = -HALF_LOG_2PI                                   # -0.5*log(2pi) - 0 - 0
        if mixture:
            pad_lp = float(np.log(np.float32(c_narrow) + np.float32(c_wide)))
        else:
            pad_lp = log_norm_single
        lqw = lqw - n_pad * pad_lq
        lpw = lpw - n_pad * pad_lp

    return out_p[:B, :n_output], lqw, lpw


# --------------------------------------------------------------------------------------
# Demo / self-check
# --------------------------------------------------------------------------------------
if __name__ == "__main__":
    n_input, n_output, batch = 32, 16, 8

    key = jax.random.PRNGKey(0)
    k_w, k_b, k_wr, k_br, k_ew, k_eb, k_x = jax.random.split(key, 7)

    # Parameter init mirroring BBBLayer.__init__ (kaiming_uniform_, uniform bias, rho ~ N).
    gain = math.sqrt(2.0)
    w_bound = gain * math.sqrt(3.0 / n_input)
    weight_mu = jax.random.uniform(k_w, (n_output, n_input), jnp.float32,
                                   minval=-w_bound, maxval=w_bound)
    b_bound = 1.0 / math.sqrt(n_input)
    bias_mu = jax.random.uniform(k_b, (n_output,), jnp.float32,
                                 minval=-b_bound, maxval=b_bound)
    weight_rho = Hyper.rho_init + 0.05 * jax.random.normal(k_wr, (n_output, n_input), jnp.float32)
    bias_rho = Hyper.rho_init + 0.05 * jax.random.normal(k_br, (n_output,), jnp.float32)

    # Reparameterization noise (epsilon_W, epsilon_b ~ N(0,1)), sampled in the wrapper.
    eps_W = jax.random.normal(k_ew, (n_output, n_input), jnp.float32)
    eps_b = jax.random.normal(k_eb, (n_output,), jnp.float32)

    data = jax.random.normal(k_x, (batch, n_input), jnp.float32)

    out, lqw, lpw = bbb_forward(data, weight_mu, weight_rho, bias_mu, bias_rho,
                                eps_W, eps_b, hyper=Hyper, infer=False)
    out_infer = bbb_forward(data, weight_mu, weight_rho, bias_mu, bias_rho,
                            eps_W, eps_b, hyper=Hyper, infer=True)
    jax.block_until_ready((out, lqw, lpw, out_infer))

    # Pure-JAX reference mirroring the PyTorch forward exactly (sanity check).
    W_ref = weight_mu + jnp.log(1.0 + jnp.exp(weight_rho)) * eps_W
    b_ref = bias_mu + jnp.log(1.0 + jnp.exp(bias_rho)) * eps_b
    o_ref = data @ W_ref.T + b_ref
    o_inf_ref = data @ weight_mu.T + bias_mu

    def _lgr(x, mu, rho):
        return (-HALF_LOG_2PI) - rho - (x - mu) ** 2 / (2.0 * jnp.exp(rho) ** 2)

    def _gauss(x, sigma):
        return GAUSSIAN_SCALER / sigma * jnp.exp(-x ** 2 / (2.0 * sigma ** 2))

    def _mix(x):  # mixture_prior(x, pi, s2, s1) as called in the reference
        return jnp.log(Hyper.pi * _gauss(x, Hyper.s2) + (1.0 - Hyper.pi) * _gauss(x, Hyper.s1))

    lq_ref = _lgr(W_ref, weight_mu, weight_rho).sum() + _lgr(b_ref, bias_mu, bias_rho).sum()
    lp_ref = _mix(W_ref).sum() + _mix(b_ref).sum()

    np.testing.assert_allclose(np.asarray(out), np.asarray(o_ref), rtol=5e-2, atol=1e-1)
    np.testing.assert_allclose(np.asarray(out_infer), np.asarray(o_inf_ref), rtol=5e-2, atol=1e-1)
    np.testing.assert_allclose(float(lqw), float(lq_ref), rtol=2e-3, atol=5.0)
    np.testing.assert_allclose(float(lpw), float(lp_ref), rtol=2e-3, atol=5.0)

    assert out.shape == (batch, n_output)
    assert out_infer.shape == (batch, n_output)
    assert bool(jnp.isfinite(lqw)) and bool(jnp.isfinite(lpw))

    print("KERNEL_OK")
</pallas_src>

<mosaic_0001>
module attributes {stable_mosaic.version = 11 : i64} {
  func.func @_bbb_kernel(%arg0: i32, %arg1: i32, %arg2: memref<8x128xf32, #tpu.memory_space<vmem>>, %arg3: memref<128x128xf32, #tpu.memory_space<vmem>>, %arg4: memref<128x128xf32, #tpu.memory_space<vmem>>, %arg5: memref<128x128xf32, #tpu.memory_space<vmem>>, %arg6: memref<1x128xf32, #tpu.memory_space<vmem>>, %arg7: memref<1x128xf32, #tpu.memory_space<vmem>>, %arg8: memref<1x128xf32, #tpu.memory_space<vmem>>, %arg9: memref<8x128xf32, #tpu.memory_space<vmem>>, %arg10: memref<1x128xf32, #tpu.memory_space<vmem>>, %arg11: memref<1x128xf32, #tpu.memory_space<vmem>>, %arg12: memref<8x128xf32, #tpu.memory_space<vmem>>, %arg13: memref<128x128xf32, #tpu.memory_space<vmem>>, %arg14: memref<128x128xf32, #tpu.memory_space<vmem>>) attributes {dimension_semantics = [#tpu.dimension_semantics<parallel>, #tpu.dimension_semantics<arbitrary>], iteration_bounds = array<i64: 1, 1>, scalar_prefetch = 0 : i64, scratch_operands = 3 : i64, tpu.core_type = #tpu.core_type<tc>, window_params = [{transform_indices = @transform_0, window_bounds = array<i64: 8, 128>}, {transform_indices = @transform_1, window_bounds = array<i64: 128, 128>}, {transform_indices = @transform_2, window_bounds = array<i64: 128, 128>}, {transform_indices = @transform_3, window_bounds = array<i64: 128, 128>}, {transform_indices = @transform_4, window_bounds = array<i64: 1, 128>}, {transform_indices = @transform_5, window_bounds = array<i64: 1, 128>}, {transform_indices = @transform_6, window_bounds = array<i64: 1, 128>}, {transform_indices = @transform_7, window_bounds = array<i64: 8, 128>}, {transform_indices = @transform_8, window_bounds = array<i64: 1, 128>}, {transform_indices = @transform_9, window_bounds = array<i64: 1, 128>}]} {
    %c0_i32 = arith.constant 0 : i32
    %0 = arith.cmpi eq, %arg1, %c0_i32 : i32
    %1 = arith.extui %0 : i1 to i32
    %c0_i32_0 = arith.constant 0 : i32
    %2 = arith.cmpi ne, %1, %c0_i32_0 : i32
    scf.if %2 {
      %cst_33 = arith.constant 0.000000e+00 : f32
      %56 = vector.broadcast %cst_33 : f32 to vector<8x128xf32>
      %c0_34 = arith.constant 0 : index
      %c0_35 = arith.constant 0 : index
      %57 = vector.load %arg12[%c0_34, %c0_35] : memref<8x128xf32, #tpu.memory_space<vmem>>, vector<8x128xf32>
      tpu.vector_store %arg12[%c0_34, %c0_35], %56 {strides = array<i32>} : memref<8x128xf32, #tpu.memory_space<vmem>>, vector<8x128xf32>,
      %cst_36 = arith.constant 0.000000e+00 : f32
      %58 = vector.broadcast %cst_36 : f32 to vector<128x128xf32>
      %c0_37 = arith.constant 0 : index
      %c0_38 = arith.constant 0 : index
      %59 = vector.load %arg13[%c0_37, %c0_38] : memref<128x128xf32, #tpu.memory_space<vmem>>, vector<128x128xf32>
      tpu.vector_store %arg13[%c0_37, %c0_38], %58 {strides = array<i32>} : memref<128x128xf32, #tpu.memory_space<vmem>>, vector<128x128xf32>,
      %cst_39 = arith.constant 0.000000e+00 : f32
      %60 = vector.broadcast %cst_39 : f32 to vector<128x128xf32>
      %c0_40 = arith.constant 0 : index
      %c0_41 = arith.constant 0 : index
      %61 = vector.load %arg14[%c0_40, %c0_41] : memref<128x128xf32, #tpu.memory_space<vmem>>, vector<128x128xf32>
      tpu.vector_store %arg14[%c0_40, %c0_41], %60 {strides = array<i32>} : memref<128x128xf32, #tpu.memory_space<vmem>>, vector<128x128xf32>,
    } else {
    }
    %c0 = arith.constant 0 : index
    %c0_1 = arith.constant 0 : index
    %3 = vector.load %arg3[%c0, %c0_1] : memref<128x128xf32, #tpu.memory_space<vmem>>, vector<128x128xf32>
    %c0_2 = arith.constant 0 : index
    %c0_3 = arith.constant 0 : index
    %4 = vector.load %arg4[%c0_2, %c0_3] : memref<128x128xf32, #tpu.memory_space<vmem>>, vector<128x128xf32>
    %cst = arith.constant 2.000000e+01 : f32
    %5 = vector.broadcast %cst : f32 to vector<128x128xf32>
    %6 = arith.cmpf ogt, %4, %5 : vector<128x128xf32>
    %7 = math.exp %4 : vector<128x128xf32>
    %cst_4 = arith.constant 1.000000e+00 : f32
    %8 = vector.broadcast %cst_4 : f32 to vector<128x128xf32>
    %9 = arith.addf %8, %7 : vector<128x128xf32>
    %10 = math.log %9 : vector<128x128xf32>
    %11 = arith.select %6, %4, %10 : vector<128x128xi1>, vector<128x128xf32>
    %c0_5 = arith.constant 0 : index
    %c0_6 = arith.constant 0 : index
    %12 = vector.load %arg5[%c0_5, %c0_6] : memref<128x128xf32, #tpu.memory_space<vmem>>, vector<128x128xf32>
    %13 = arith.mulf %11, %12 : vector<128x128xf32>
    %14 = arith.addf %3, %13 : vector<128x128xf32>
    %c0_7 = arith.constant 0 : index
    %c0_8 = arith.constant 0 : index
    %15 = vector.load %arg12[%c0_7, %c0_8] : memref<8x128xf32, #tpu.memory_space<vmem>>, vector<8x128xf32>
    %c0_9 = arith.constant 0 : index
    %c0_10 = arith.constant 0 : index
    %16 = vector.load %arg2[%c0_9, %c0_10] : memref<8x128xf32, #tpu.memory_space<vmem>>, vector<8x128xf32>
    %cst_11 = arith.constant dense<0.000000e+00> : vector<8x128xf32>
    %17 = tpu.matmul %16, %14, %cst_11 {dimension_numbers = #tpu.dot_dimension_numbers<[1], [0], [0], [1], [0, 0, 1, 1], [], []>} : vector<8x128xf32>, vector<128x128xf32>, vector<8x128xf32> -> vector<8x128xf32>
    %18 = arith.addf %15, %17 : vector<8x128xf32>
    %c0_12 = arith.constant 0 : index
    %c0_13 = arith.constant 0 : index
    %19 = vector.load %arg12[%c0_12, %c0_13] : memref<8x128xf32, #tpu.memory_space<vmem>>, vector<8x128xf32>
    tpu.vector_store %arg12[%c0_12, %c0_13], %18 {strides = array<i32>} : memref<8x128xf32, #tpu.memory_space<vmem>>, vector<8x128xf32>,
    %cst_14 = arith.constant -0.918938517 : f32
    %20 = vector.broadcast %cst_14 : f32 to vector<128x128xf32>
    %21 = arith.subf %20, %4 : vector<128x128xf32>
    %22 = arith.mulf %13, %13 : vector<128x128xf32>
    %cst_15 = arith.constant -2.000000e+00 : f32
    %23 = vector.broadcast %cst_15 : f32 to vector<128x128xf32>
    %24 = arith.mulf %23, %4 : vector<128x128xf32>
    %25 = math.exp %24 : vector<128x128xf32>
    %cst_16 = arith.constant 5.000000e-01 : f32
    %26 = vector.broadcast %cst_16 : f32 to vector<128x128xf32>
    %27 = arith.mulf %26, %25 : vector<128x128xf32>
    %28 = arith.mulf %22, %27 : vector<128x128xf32>
    %29 = arith.subf %21, %28 : vector<128x128xf32>
    %c0_17 = arith.constant 0 : index
    %c0_18 = arith.constant 0 : index
    %30 = vector.load %arg13[%c0_17, %c0_18] : memref<128x128xf32, #tpu.memory_space<vmem>>, vector<128x128xf32>
    %31 = arith.addf %30, %29 : vector<128x128xf32>
    %c0_19 = arith.constant 0 : index
    %c0_20 = arith.constant 0 : index
    %32 = vector.load %arg13[%c0_19, %c0_20] : memref<128x128xf32, #tpu.memory_space<vmem>>, vector<128x128xf32>
    tpu.vector_store %arg13[%c0_19, %c0_20], %31 {strides = array<i32>} : memref<128x128xf32, #tpu.memory_space<vmem>>, vector<128x128xf32>,
    %33 = arith.mulf %14, %14 : vector<128x128xf32>
    %cst_21 = arith.constant 0.000000e+00 : f32
    %34 = vector.broadcast %cst_21 : f32 to vector<128x128xf32>
    %35 = arith.subf %34, %33 : vector<128x128xf32>
    %cst_22 = arith.constant 617283.938 : f32
    %36 = vector.broadcast %cst_22 : f32 to vector<128x128xf32>
    %37 = arith.mulf %35, %36 : vector<128x128xf32>
    %38 = math.exp %37 : vector<128x128xf32>
    %cst_23 = arith.constant 221.634598 : f32
    %39 = vector.broadcast %cst_23 : f32 to vector<128x128xf32>
    %40 = arith.mulf %39, %38 : vector<128x128xf32>
    %cst_24 = arith.constant 0.000000e+00 : f32
    %41 = vector.broadcast %cst_24 : f32 to vector<128x128xf32>
    %42 = arith.subf %41, %33 : vector<128x128xf32>
    %cst_25 = arith.constant 5.000000e-01 : f32
    %43 = vector.broadcast %cst_25 : f32 to vector<128x128xf32>
    %44 = arith.mulf %42, %43 : vector<128x128xf32>
    %45 = math.exp %44 : vector<128x128xf32>
    %cst_26 = arith.constant 0.199471146 : f32
    %46 = vector.broadcast %cst_26 : f32 to vector<128x128xf32>
    %47 = arith.mulf %46, %45 : vector<128x128xf32>
    %48 = arith.addf %40, %47 : vector<128x128xf32>
    %49 = math.log %48 : vector<128x128xf32>
    %c0_27 = arith.constant 0 : index
    %c0_28 = arith.constant 0 : index
    %50 = vector.load %arg14[%c0_27, %c0_28] : memref<128x128xf32, #tpu.memory_space<vmem>>, vector<128x128xf32>
    %51 = arith.addf %50, %49 : vector<128x128xf32>
    %c0_29 = arith.constant 0 : index
    %c0_30 = arith.constant 0 : index
    %52 = vector.load %arg14[%c0_29, %c0_30] : memref<128x128xf32, #tpu.memory_space<vmem>>, vector<128x128xf32>
    tpu.vector_store %arg14[%c0_29, %c0_30], %51 {strides = array<i32>} : memref<128x128xf32, #tpu.memory_space<vmem>>, vector<128x128xf32>,
    %c0_i32_31 = arith.constant 0 : i32
    %53 = arith.cmpi eq, %arg1, %c0_i32_31 : i32
    %54 = arith.extui %53 : i1 to i32
    %c0_i32_32 = arith.constant 0 : i32
    %55 = arith.cmpi ne, %54, %c0_i32_32 : i32
    scf.if %55 {
      %c0_33 = arith.constant 0 : index
      %c0_34 = arith.constant 0 : index
      %56 = vector.load %arg6[%c0_33, %c0_34] : memref<1x128xf32, #tpu.memory_space<vmem>>, vector<1x128xf32>
      %c0_35 = arith.constant 0 : index
      %c0_36 = arith.constant 0 : index
      %57 = vector.load %arg7[%c0_35, %c0_36] : memref<1x128xf32, #tpu.memory_space<vmem>>, vector<1x128xf32>
      %cst_37 = arith.constant 2.000000e+01 : f32
      %58 = vector.broadcast %cst_37 : f32 to vector<1x128xf32>
      %59 = arith.cmpf ogt, %57, %58 : vector<1x128xf32>
      %60 = math.exp %57 : vector<1x128xf32>
      %cst_38 = arith.constant 1.000000e+00 : f32
      %61 = vector.broadcast %cst_38 : f32 to vector<1x128xf32>
      %62 = arith.addf %61, %60 : vector<1x128xf32>
      %63 = math.log %62 : vector<1x128xf32>
      %64 = arith.select %59, %57, %63 : vector<1x128xi1>, vector<1x128xf32>
      %c0_39 = arith.constant 0 : index
      %c0_40 = arith.constant 0 : index
      %65 = vector.load %arg8[%c0_39, %c0_40] : memref<1x128xf32, #tpu.memory_space<vmem>>, vector<1x128xf32>
      %66 = arith.mulf %64, %65 : vector<1x128xf32>
      %67 = arith.addf %56, %66 : vector<1x128xf32>
      %c0_41 = arith.constant 0 : index
      %c0_42 = arith.constant 0 : index
      %68 = vector.load %arg12[%c0_41, %c0_42] : memref<8x128xf32, #tpu.memory_space<vmem>>, vector<8x128xf32>
      %69 = vector.broadcast %67 : vector<1x128xf32> to vector<8x128xf32>
      %70 = arith.addf %68, %69 : vector<8x128xf32>
      %c0_43 = arith.constant 0 : index
      %c0_44 = arith.constant 0 : index
      %71 = vector.load %arg9[%c0_43, %c0_44] : memref<8x128xf32, #tpu.memory_space<vmem>>, vector<8x128xf32>
      tpu.vector_store %arg9[%c0_43, %c0_44], %70 {strides = array<i32>} : memref<8x128xf32, #tpu.memory_space<vmem>>, vector<8x128xf32>,
      %cst_45 = arith.constant -0.918938517 : f32
      %72 = vector.broadcast %cst_45 : f32 to vector<1x128xf32>
      %73 = arith.subf %72, %57 : vector<1x128xf32>
      %74 = arith.mulf %66, %66 : vector<1x128xf32>
      %cst_46 = arith.constant -2.000000e+00 : f32
      %75 = vector.broadcast %cst_46 : f32 to vector<1x128xf32>
      %76 = arith.mulf %75, %57 : vector<1x128xf32>
      %77 = math.exp %76 : vector<1x128xf32>
      %cst_47 = arith.constant 5.000000e-01 : f32
      %78 = vector.broadcast %cst_47 : f32 to vector<1x128xf32>
      %79 = arith.mulf %78, %77 : vector<1x128xf32>
      %80 = arith.mulf %74, %79 : vector<1x128xf32>
      %81 = arith.subf %73, %80 : vector<1x128xf32>
      %82 = arith.mulf %67, %67 : vector<1x128xf32>
      %cst_48 = arith.constant 0.000000e+00 : f32
      %83 = vector.broadcast %cst_48 : f32 to vector<1x128xf32>
      %84 = arith.subf %83, %82 : vector<1x128xf32>
      %cst_49 = arith.constant 617283.938 : f32
      %85 = vector.broadcast %cst_49 : f32 to vector<1x128xf32>
      %86 = arith.mulf %84, %85 : vector<1x128xf32>
      %87 = math.exp %86 : vector<1x128xf32>
      %cst_50 = arith.constant 221.634598 : f32
      %88 = vector.broadcast %cst_50 : f32 to vector<1x128xf32>
      %89 = arith.mulf %88, %87 : vector<1x128xf32>
      %cst_51 = arith.constant 0.000000e+00 : f32
      %90 = vector.broadcast %cst_51 : f32 to vector<1x128xf32>
      %91 = arith.subf %90, %82 : vector<1x128xf32>
      %cst_52 = arith.constant 5.000000e-01 : f32
      %92 = vector.broadcast %cst_52 : f32 to vector<1x128xf32>
      %93 = arith.mulf %91, %92 : vector<1x128xf32>
      %94 = math.exp %93 : vector<1x128xf32>
      %cst_53 = arith.constant 0.199471146 : f32
      %95 = vector.broadcast %cst_53 : f32 to vector<1x128xf32>
      %96 = arith.mulf %95, %94 : vector<1x128xf32>
      %97 = arith.addf %89, %96 : vector<1x128xf32>
      %98 = math.log %97 : vector<1x128xf32>
      %c0_54 = arith.constant 0 : index
      %c0_55 = arith.constant 0 : index
      %99 = vector.load %arg13[%c0_54, %c0_55] : memref<128x128xf32, #tpu.memory_space<vmem>>, vector<128x128xf32>
      %100 = vector.shape_cast %99 : vector<128x128xf32> to vector<1x128x128xf32>
      %cst_56 = arith.constant dense<0.000000e+00> : vector<1xf32>
      %101 = vector.multi_reduction <add>, %100, %cst_56 [1, 2] : vector<1x128x128xf32> to vector<1xf32>
      %102 = vector.shape_cast %101 : vector<1xf32> to vector<1x1x1xf32>
      %103 = vector.extract %102[0, 0, 0] : f32 from vector<1x1x1xf32>
      %104 = vector.shape_cast %81 : vector<1x128xf32> to vector<1x1x128xf32>
      %cst_57 = arith.constant dense<0.000000e+00> : vector<1xf32>
      %105 = vector.multi_reduction <add>, %104, %cst_57 [1, 2] : vector<1x1x128xf32> to vector<1xf32>
      %106 = vector.shape_cast %105 : vector<1xf32> to vector<1x1x1xf32>
      %107 = vector.extract %106[0, 0, 0] : f32 from vector<1x1x1xf32>
      %108 = arith.addf %103, %107 : f32
      %c0_58 = arith.constant 0 : index
      %c0_59 = arith.constant 0 : index
      %109 = vector.load %arg14[%c0_58, %c0_59] : memref<128x128xf32, #tpu.memory_space<vmem>>, vector<128x128xf32>
      %110 = vector.shape_cast %109 : vector<128x128xf32> to vector<1x128x128xf32>
      %cst_60 = arith.constant dense<0.000000e+00> : vector<1xf32>
      %111 = vector.multi_reduction <add>, %110, %cst_60 [1, 2] : vector<1x128x128xf32> to vector<1xf32>
      %112 = vector.shape_cast %111 : vector<1xf32> to vector<1x1x1xf32>
      %113 = vector.extract %112[0, 0, 0] : f32 from vector<1x1x1xf32>
      %114 = vector.shape_cast %98 : vector<1x128xf32> to vector<1x1x128xf32>
      %cst_61 = arith.constant dense<0.000000e+00> : vector<1xf32>
      %115 = vector.multi_reduction <add>, %114, %cst_61 [1, 2] : vector<1x1x128xf32> to vector<1xf32>
      %116 = vector.shape_cast %115 : vector<1xf32> to vector<1x1x1xf32>
      %117 = vector.extract %116[0, 0, 0] : f32 from vector<1x1x1xf32>
      %118 = arith.addf %113, %117 : f32
      %cst_62 = arith.constant 0.000000e+00 : f32
      %119 = vector.broadcast %cst_62 : f32 to vector<1x128xf32>
      %120 = vector.broadcast %108 : f32 to vector<1x128xf32>
      %121 = arith.addf %120, %119 : vector<1x128xf32>
      %c0_63 = arith.constant 0 : index
      %c0_64 = arith.constant 0 : index
      %122 = vector.load %arg10[%c0_63, %c0_64] : memref<1x128xf32, #tpu.memory_space<vmem>>, vector<1x128xf32>
      tpu.vector_store %arg10[%c0_63, %c0_64], %121 {strides = array<i32>} : memref<1x128xf32, #tpu.memory_space<vmem>>, vector<1x128xf32>,
      %cst_65 = arith.constant 0.000000e+00 : f32
      %123 = vector.broadcast %cst_65 : f32 to vector<1x128xf32>
      %124 = vector.broadcast %118 : f32 to vector<1x128xf32>
      %125 = arith.addf %124, %123 : vector<1x128xf32>
      %c0_66 = arith.constant 0 : index
      %c0_67 = arith.constant 0 : index
      %126 = vector.load %arg11[%c0_66, %c0_67] : memref<1x128xf32, #tpu.memory_space<vmem>>, vector<1x128xf32>
      tpu.vector_store %arg11[%c0_66, %c0_67], %125 {strides = array<i32>} : memref<1x128xf32, #tpu.memory_space<vmem>>, vector<1x128xf32>,
    } else {
    }
    return
  }
  func.func @transform_0(%arg0: i32, %arg1: i32) -> (i32, i32) {
    %c0_i32 = arith.constant 0 : i32
    %c0_i32_0 = arith.constant 0 : i32
    return %c0_i32, %arg1 : i32, i32
  }
  func.func @transform_1(%arg0: i32, %arg1: i32) -> (i32, i32) {
    %c0_i32 = arith.constant 0 : i32
    return %arg1, %arg0 : i32, i32
  }
  func.func @transform_2(%arg0: i32, %arg1: i32) -> (i32, i32) {
    %c0_i32 = arith.constant 0 : i32
    return %arg1, %arg0 : i32, i32
  }
  func.func @transform_3(%arg0: i32, %arg1: i32) -> (i32, i32) {
    %c0_i32 = arith.constant 0 : i32
    return %arg1, %arg0 : i32, i32
  }
  func.func @transform_4(%arg0: i32, %arg1: i32) -> (i32, i32) {
    %c0_i32 = arith.constant 0 : i32
    %c0_i32_0 = arith.constant 0 : i32
    return %c0_i32, %arg0 : i32, i32
  }
  func.func @transform_5(%arg0: i32, %arg1: i32) -> (i32, i32) {
    %c0_i32 = arith.constant 0 : i32
    %c0_i32_0 = arith.constant 0 : i32
    return %c0_i32, %arg0 : i32, i32
  }
  func.func @transform_6(%arg0: i32, %arg1: i32) -> (i32, i32) {
    %c0_i32 = arith.constant 0 : i32
    %c0_i32_0 = arith.constant 0 : i32
    return %c0_i32, %arg0 : i32, i32
  }
  func.func @transform_7(%arg0: i32, %arg1: i32) -> (i32, i32) {
    %c0_i32 = arith.constant 0 : i32
    %c0_i32_0 = arith.constant 0 : i32
    return %c0_i32, %arg0 : i32, i32
  }
  func.func @transform_8(%arg0: i32, %arg1: i32) -> (i32, i32) {
    %c0_i32 = arith.constant 0 : i32
    %c0_i32_0 = arith.constant 0 : i32
    return %c0_i32, %arg0 : i32, i32
  }
  func.func @transform_9(%arg0: i32, %arg1: i32) -> (i32, i32) {
    %c0_i32 = arith.constant 0 : i32
    %c0_i32_0 = arith.constant 0 : i32
    return %c0_i32, %arg0 : i32, i32
  }
}

</mosaic_0001>

<llo_original>
// kernel: tpu_custom_call.1
$region0: #{tpu_custom_call.1}
  #allocation0 [shape = 'u32[]', space=smem, size = 0x4, offset = 0x4, fixed_abs, tag = 'smem constant byte address 0x4 - core index']
  #allocation1 [shape = 'u32[144,128]{1,0:T(1,128)}', space=vmem, size = 0x12000, scoped, tag = 'internal scratch']
  #allocation2 [shape = 'f32[8,128]{1,0:T(8,128)}', space=vmem, size = 0x1000, scoped, tag = 'scratch operand']
  #allocation3 [shape = 'f32[128,128]{1,0:T(8,128)}', space=vmem, size = 0x10000, scoped, tag = 'scratch operand']
  #allocation4 [shape = 'f32[128,128]{1,0:T(8,128)}', space=vmem, size = 0x10000, scoped, tag = 'scratch operand']
  %s0 = inlined_call_operand.hbm [shape: f32[8,128], index: 0, kind: input, shape index: {}]
  %s1 = inlined_call_operand.hbm [shape: f32[128,128], index: 1, kind: input, shape index: {}]
  %s2 = inlined_call_operand.hbm [shape: f32[128,128], index: 2, kind: input, shape index: {}]
  %s3 = inlined_call_operand.hbm [shape: f32[128,128], index: 3, kind: input, shape index: {}]
  %s4 = inlined_call_operand.vmem [shape: f32[1,128], index: 4, kind: input, shape index: {}]
  %s5 = inlined_call_operand.vmem [shape: f32[1,128], index: 5, kind: input, shape index: {}]
  %s6 = inlined_call_operand.vmem [shape: f32[1,128], index: 6, kind: input, shape index: {}]
  %s7 = inlined_call_operand.hbm [shape: f32[8,128], index: 7, kind: output, shape index: {0}]
  %s8 = inlined_call_operand.hbm [shape: f32[1,128], index: 8, kind: output, shape index: {1}]
  %s9 = inlined_call_operand.hbm [shape: f32[1,128], index: 9, kind: output, shape index: {2}]
  %10 = xla_tuple %s7, %s8, %s9
  %s11 = sld [smem:[#allocation0]]
  $region78: #{tpu_custom_call.1} parent=0
    _
  %s13 = ssub.s32 1, %s11
  %s14 = scalar_select 0, %s13, %s11
  $region1: #{tpu_custom_call.1} parent=0
    #allocation5 [shape = 'u8[4096]{0}', space=vmem, size = 0x1000, scoped, tag = 'input window, operand 0, single buffered']
    #allocation6 [shape = 's32[1]{0}', space=sflag, size = 0x4, scoped, tag = 'scoped memory for tpu_custom_call.1']
    #allocation7 [shape = 's32[1]{0}', space=sflag, size = 0x4, scoped, tag = 'scoped memory for tpu_custom_call.1']
    #allocation8 [shape = 'u8[65536]{0}', space=vmem, size = 0x10000, scoped, tag = 'input window, operand 1, single buffered']
    #allocation9 [shape = 's32[1]{0}', space=sflag, size = 0x4, scoped, tag = 'scoped memory for tpu_custom_call.1']
    #allocation10 [shape = 'u8[65536]{0}', space=vmem, size = 0x10000, scoped, tag = 'input window, operand 2, single buffered']
    #allocation11 [shape = 'u8[65536]{0}', space=vmem, size = 0x10000, scoped, tag = 'input window, operand 3, single buffered']
    #allocation12 [shape = 's32[1]{0}', space=sflag, size = 0x4, scoped, tag = 'scoped memory for tpu_custom_call.1']
    #allocation13 [shape = 'u8[4096]{0}', space=vmem, size = 0x1000, scoped, tag = 'output window, operand 0, single buffered']
    #allocation14 [shape = 'u8[512]{0}', space=vmem, size = 0x400, scoped, tag = 'output window, operand 1, single buffered']
    #allocation15 [shape = 's32[1]{0}', space=sflag, size = 0x4, scoped, tag = 'scoped memory for tpu_custom_call.1']
    #allocation16 [shape = 'u8[512]{0}', space=vmem, size = 0x400, scoped, tag = 'output window, operand 2, single buffered']
    %15 = vsyncpa [#allocation6], 0
    %16 = vsyncpa [#allocation9], 0
    %17 = vsyncpa [#allocation12], 0
    %18 = vsyncpa [#allocation7], 0
    %19 = vsyncpa [#allocation15], 0
    // Predicated region
    $region2: #{tpu_custom_call.1} parent=1 // pred_check
      _
    $region3: #{tpu_custom_call.1} parent=1 // pred_check_branch
      %21 = sbr.rel (0) target = $region5
    $region4: #{tpu_custom_call.1} parent=1 // pred_region
      %s23 = ssub.s32 128, 128
      %24 = vsyncadd [#allocation6], %s23
      %s26 = sshll.u32 [#allocation5], 4
      %s27 = int_to_ptr.vmem [resolvable:$true] %s26
      %29 = dma.hbm_to_vmem [thread:$0]  %s0, 128, %s27, [#allocation6]
    $region5: #{tpu_custom_call.1} parent=1 // pred_fallthru
      _
    // Predicated region
    $region6: #{tpu_custom_call.1} parent=1 // pred_check
      _
    $region7: #{tpu_custom_call.1} parent=1 // pred_check_branch
      %31 = sbr.rel (0) target = $region9
    $region8: #{tpu_custom_call.1} parent=1 // pred_region
      %s33 = ssub.s32 2048, 2048
      %34 = vsyncadd [#allocation9], %s33
      %s35 = sshll.u32 [#allocation8], 4
      %s36 = int_to_ptr.vmem [resolvable:$true] %s35
      %41 = dma.hbm_to_vmem [thread:$0]  %s1, 2048, %s36, [#allocation9], 128, 128, 8
    $region9: #{tpu_custom_call.1} parent=1 // pred_fallthru
      _
    // Predicated region
    $region10: #{tpu_custom_call.1} parent=1 // pred_check
      _
    $region11: #{tpu_custom_call.1} parent=1 // pred_check_branch
      %43 = sbr.rel (0) target = $region13
    $region12: #{tpu_custom_call.1} parent=1 // pred_region
      %s45 = ssub.s32 2048, 2048
      %46 = vsyncadd [#allocation9], %s45
      %s47 = sshll.u32 [#allocation10], 4
      %s48 = int_to_ptr.vmem [resolvable:$true] %s47
      %53 = dma.hbm_to_vmem [thread:$0]  %s2, 2048, %s48, [#allocation9], 128, 128, 8
    $region13: #{tpu_custom_call.1} parent=1 // pred_fallthru
      _
    // Predicated region
    $region14: #{tpu_custom_call.1} parent=1 // pred_check
      _
    $region15: #{tpu_custom_call.1} parent=1 // pred_check_branch
      %55 = sbr.rel (0) target = $region17
    $region16: #{tpu_custom_call.1} parent=1 // pred_region
      %s57 = ssub.s32 2048, 2048
      %58 = vsyncadd [#allocation12], %s57
      %s59 = sshll.u32 [#allocation11], 4
      %s60 = int_to_ptr.vmem [resolvable:$true] %s59
      %65 = dma.hbm_to_vmem [thread:$0]  %s3, 2048, %s60, [#allocation12], 128, 128, 8
    $region17: #{tpu_custom_call.1} parent=1 // pred_fallthru
      _
    // Predicated region
    $region18: #{tpu_custom_call.1} parent=1 // pred_check
      _
    $region19: #{tpu_custom_call.1} parent=1 // pred_check_branch
      %67 = sbr.rel (0) target = $region21
    $region20: #{tpu_custom_call.1} parent=1 // pred_region
      _
    $region21: #{tpu_custom_call.1} parent=1 // pred_fallthru
      _
    // Predicated region
    $region22: #{tpu_custom_call.1} parent=1 // pred_check
      _
    $region23: #{tpu_custom_call.1} parent=1 // pred_check_branch
      %69 = sbr.rel (0) target = $region25
    $region24: #{tpu_custom_call.1} parent=1 // pred_region
      _
    $region25: #{tpu_custom_call.1} parent=1 // pred_fallthru
      _
    // Predicated region
    $region26: #{tpu_custom_call.1} parent=1 // pred_check
      _
    $region27: #{tpu_custom_call.1} parent=1 // pred_check_branch
      %71 = sbr.rel (0) target = $region29
    $region28: #{tpu_custom_call.1} parent=1 // pred_region
      _
    $region29: #{tpu_custom_call.1} parent=1 // pred_fallthru
      _
    // Predicated region
    $region30: #{tpu_custom_call.1} parent=1 // pred_check
      _
    $region31: #{tpu_custom_call.1} parent=1 // pred_check_branch
      %73 = sbr.rel (0) target = $region33
    $region32: #{tpu_custom_call.1} parent=1 // pred_region
      %74 = dma.done [#allocation6], 128
    $region33: #{tpu_custom_call.1} parent=1 // pred_fallthru
      _
    // Predicated region
    $region34: #{tpu_custom_call.1} parent=1 // pred_check
      _
    $region35: #{tpu_custom_call.1} parent=1 // pred_check_branch
      %76 = sbr.rel (0) target = $region37
    $region36: #{tpu_custom_call.1} parent=1 // pred_region
      %77 = dma.done [#allocation9], 2048
    $region37: #{tpu_custom_call.1} parent=1 // pred_fallthru
      _
    // Predicated region
    $region38: #{tpu_custom_call.1} parent=1 // pred_check
      _
    $region39: #{tpu_custom_call.1} parent=1 // pred_check_branch
      %79 = sbr.rel (0) target = $region41
    $region40: #{tpu_custom_call.1} parent=1 // pred_region
      %80 = dma.done [#allocation9], 2048
    $region41: #{tpu_custom_call.1} parent=1 // pred_fallthru
      _
    // Predicated region
    $region42: #{tpu_custom_call.1} parent=1 // pred_check
      _
    $region43: #{tpu_custom_call.1} parent=1 // pred_check_branch
      %82 = sbr.rel (0) target = $region45
    $region44: #{tpu_custom_call.1} parent=1 // pred_region
      %83 = dma.done [#allocation12], 2048
    $region45: #{tpu_custom_call.1} parent=1 // pred_fallthru
      _
    %p84 = scmp.eq.s32.totalorder 0, 0
    // Predicated region
    $region46: #{tpu_custom_call.1} parent=1 // pred_check
      %p85 = pneg %p84
    $region47: #{tpu_custom_call.1} parent=1 // pred_check_branch
      %87 = sbr.rel (%p85) target = $region49
    $region48: #{tpu_custom_call.1} parent=1 // pred_region
      %88 = vst [vmem:[#allocation2] sm:$0xff] 0.0
      %89 = vst [vmem:[#allocation3] sm:$0xff] 0.0
      %90 = vst [vmem:[#allocation3 + $0x8] sm:$0xff] 0.0
      %91 = vst [vmem:[#allocation3 + $0x10] sm:$0xff] 0.0
      %92 = vst [vmem:[#allocation3 + $0x18] sm:$0xff] 0.0
      %93 = vst [vmem:[#allocation3 + $0x20] sm:$0xff] 0.0
      %94 = vst [vmem:[#allocation3 + $0x28] sm:$0xff] 0.0
      %95 = vst [vmem:[#allocation3 + $0x30] sm:$0xff] 0.0
      %96 = vst [vmem:[#allocation3 + $0x38] sm:$0xff] 0.0
      %97 = vst [vmem:[#allocation3 + $0x40] sm:$0xff] 0.0
      %98 = vst [vmem:[#allocation3 + $0x48] sm:$0xff] 0.0
      %99 = vst [vmem:[#allocation3 + $0x50] sm:$0xff] 0.0
      %100 = vst [vmem:[#allocation3 + $0x58] sm:$0xff] 0.0
      %101 = vst [vmem:[#allocation3 + $0x60] sm:$0xff] 0.0
      %102 = vst [vmem:[#allocation3 + $0x68] sm:$0xff] 0.0
      %103 = vst [vmem:[#allocation3 + $0x70] sm:$0xff] 0.0
      %104 = vst [vmem:[#allocation3 + $0x78] sm:$0xff] 0.0
      %105 = vst [vmem:[#allocation4] sm:$0xff] 0.0
      %106 = vst [vmem:[#allocation4 + $0x8] sm:$0xff] 0.0
      %107 = vst [vmem:[#allocation4 + $0x10] sm:$0xff] 0.0
      %108 = vst [vmem:[#allocation4 + $0x18] sm:$0xff] 0.0
      %109 = vst [vmem:[#allocation4 + $0x20] sm:$0xff] 0.0
      %110 = vst [vmem:[#allocation4 + $0x28] sm:$0xff] 0.0
      %111 = vst [vmem:[#allocation4 + $0x30] sm:$0xff] 0.0
      %112 = vst [vmem:[#allocation4 + $0x38] sm:$0xff] 0.0
      %113 = vst [vmem:[#allocation4 + $0x40] sm:$0xff] 0.0
      %114 = vst [vmem:[#allocation4 + $0x48] sm:$0xff] 0.0
      %115 = vst [vmem:[#allocation4 + $0x50] sm:$0xff] 0.0
      %116 = vst [vmem:[#allocation4 + $0x58] sm:$0xff] 0.0
      %117 = vst [vmem:[#allocation4 + $0x60] sm:$0xff] 0.0
      %118 = vst [vmem:[#allocation4 + $0x68] sm:$0xff] 0.0
      %119 = vst [vmem:[#allocation4 + $0x70] sm:$0xff] 0.0
      %120 = vst [vmem:[#allocation4 + $0x78] sm:$0xff] 0.0
    $region49: #{tpu_custom_call.1} parent=1 // pred_fallthru
      _
    %v121 = vld [vmem:[#allocation8] sm:$0xff]
    %v122 = vld [vmem:[#allocation8 + $0x8] sm:$0xff]
    %v123 = vld [vmem:[#allocation8 + $0x10] sm:$0xff]
    %v124 = vld [vmem:[#allocation8 + $0x18] sm:$0xff]
    %v125 = vld [vmem:[#allocation8 + $0x20] sm:$0xff]
    %v126 = vld [vmem:[#allocation8 + $0x28] sm:$0xff]
    %v127 = vld [vmem:[#allocation8 + $0x30] sm:$0xff]
    %v128 = vld [vmem:[#allocation8 + $0x38] sm:$0xff]
    %v129 = vld [vmem:[#allocation8 + $0x40] sm:$0xff]
    %v130 = vld [vmem:[#allocation8 + $0x48] sm:$0xff]
    %v131 = vld [vmem:[#allocation8 + $0x50] sm:$0xff]
    %v132 = vld [vmem:[#allocation8 + $0x58] sm:$0xff]
    %v133 = vld [vmem:[#allocation8 + $0x60] sm:$0xff]
    %v134 = vld [vmem:[#allocation8 + $0x68] sm:$0xff]
    %v135 = vld [vmem:[#allocation8 + $0x70] sm:$0xff]
    %v136 = vld [vmem:[#allocation8 + $0x78] sm:$0xff]
    %v137 = vld [vmem:[#allocation10] sm:$0xff]
    %v138 = vld [vmem:[#allocation10 + $0x8] sm:$0xff]
    %v139 = vld [vmem:[#allocation10 + $0x10] sm:$0xff]
    %v140 = vld [vmem:[#allocation10 + $0x18] sm:$0xff]
    %v141 = vld [vmem:[#allocation10 + $0x20] sm:$0xff]
    %v142 = vld [vmem:[#allocation10 + $0x28] sm:$0xff]
    %v143 = vld [vmem:[#allocation10 + $0x30] sm:$0xff]
    %v144 = vld [vmem:[#allocation10 + $0x38] sm:$0xff]
    %v145 = vld [vmem:[#allocation10 + $0x40] sm:$0xff]
    %v146 = vld [vmem:[#allocation10 + $0x48] sm:$0xff]
    %v147 = vld [vmem:[#allocation10 + $0x50] sm:$0xff]
    %v148 = vld [vmem:[#allocation10 + $0x58] sm:$0xff]
    %v149 = vld [vmem:[#allocation10 + $0x60] sm:$0xff]
    %v150 = vld [vmem:[#allocation10 + $0x68] sm:$0xff]
    %v151 = vld [vmem:[#allocation10 + $0x70] sm:$0xff]
    %v152 = vld [vmem:[#allocation10 + $0x78] sm:$0xff]
    %vm153 = vcmp.gt.f32.partialorder %v137, 20.0
    %vm154 = vcmp.gt.f32.partialorder %v138, 20.0
    %vm155 = vcmp.gt.f32.partialorder %v139, 20.0
    %vm156 = vcmp.gt.f32.partialorder %v140, 20.0
    %vm157 = vcmp.gt.f32.partialorder %v141, 20.0
    %vm158 = vcmp.gt.f32.partialorder %v142, 20.0
    %vm159 = vcmp.gt.f32.partialorder %v143, 20.0
    %vm160 = vcmp.gt.f32.partialorder %v144, 20.0
    %vm161 = vcmp.gt.f32.partialorder %v145, 20.0
    %vm162 = vcmp.gt.f32.partialorder %v146, 20.0
    %vm163 = vcmp.gt.f32.partialorder %v147, 20.0
    %vm164 = vcmp.gt.f32.partialorder %v148, 20.0
    %vm165 = vcmp.gt.f32.partialorder %v149, 20.0
    %vm166 = vcmp.gt.f32.partialorder %v150, 20.0
    %vm167 = vcmp.gt.f32.partialorder %v151, 20.0
    %vm168 = vcmp.gt.f32.partialorder %v152, 20.0
    %v169 = vmul.f32 %v137, 1.442695
    %v170 = vpow.pop %v169
    %v171 = vmul.f32 %v138, 1.442695
    %v172 = vpow.pop %v171
    %v173 = vmul.f32 %v139, 1.442695
    %v174 = vpow.pop %v173
    %v175 = vmul.f32 %v140, 1.442695
    %v176 = vpow.pop %v175
    %v177 = vmul.f32 %v141, 1.442695
    %v178 = vpow.pop %v177
    %v179 = vmul.f32 %v142, 1.442695
    %v180 = vpow.pop %v179
    %v181 = vmul.f32 %v143, 1.442695
    %v182 = vpow.pop %v181
    %v183 = vmul.f32 %v144, 1.442695
    %v184 = vpow.pop %v183
    %v185 = vmul.f32 %v145, 1.442695
    %v186 = vpow.pop %v185
    %v187 = vmul.f32 %v146, 1.442695
    %v188 = vpow.pop %v187
    %v189 = vmul.f32 %v147, 1.442695
    %v190 = vpow.pop %v189
    %v191 = vmul.f32 %v148, 1.442695
    %v192 = vpow.pop %v191
    %v193 = vmul.f32 %v149, 1.442695
    %v194 = vpow.pop %v193
    %v195 = vmul.f32 %v150, 1.442695
    %v196 = vpow.pop %v195
    %v197 = vmul.f32 %v151, 1.442695
    %v198 = vpow.pop %v197
    %v199 = vmul.f32 %v152, 1.442695
    %v200 = vpow.pop %v199
    %v201 = vadd.f32 %v170, 1.0
    %v202 = vadd.f32 %v172, 1.0
    %v203 = vadd.f32 %v174, 1.0
    %v204 = vadd.f32 %v176, 1.0
    %v205 = vadd.f32 %v178, 1.0
    %v206 = vadd.f32 %v180, 1.0
    %v207 = vadd.f32 %v182, 1.0
    %v208 = vadd.f32 %v184, 1.0
    %v209 = vadd.f32 %v186, 1.0
    %v210 = vadd.f32 %v188, 1.0
    %v211 = vadd.f32 %v190, 1.0
    %v212 = vadd.f32 %v192, 1.0
    %v213 = vadd.f32 %v194, 1.0
    %v214 = vadd.f32 %v196, 1.0
    %v215 = vadd.f32 %v198, 1.0
    %v216 = vadd.f32 %v200, 1.0
    %v217 = vlog2.pop %v201
    %v218 = vmul.f32 %v217, 0.6931472
    %v219 = vlog2.pop %v202
    %v220 = vmul.f32 %v219, 0.6931472
    %v221 = vlog2.pop %v203
    %v222 = vmul.f32 %v221, 0.6931472
    %v223 = vlog2.pop %v204
    %v224 = vmul.f32 %v223, 0.6931472
    %v225 = vlog2.pop %v205
    %v226 = vmul.f32 %v225, 0.6931472
    %v227 = vlog2.pop %v206
    %v228 = vmul.f32 %v227, 0.6931472
    %v229 = vlog2.pop %v207
    %v230 = vmul.f32 %v229, 0.6931472
    %v231 = vlog2.pop %v208
    %v232 = vmul.f32 %v231, 0.6931472
    %v233 = vlog2.pop %v209
    %v234 = vmul.f32 %v233, 0.6931472
    %v235 = vlog2.pop %v210
    %v236 = vmul.f32 %v235, 0.6931472
    %v237 = vlog2.pop %v211
    %v238 = vmul.f32 %v237, 0.6931472
    %v239 = vlog2.pop %v212
    %v240 = vmul.f32 %v239, 0.6931472
    %v241 = vlog2.pop %v213
    %v242 = vmul.f32 %v241, 0.6931472
    %v243 = vlog2.pop %v214
    %v244 = vmul.f32 %v243, 0.6931472
    %v245 = vlog2.pop %v215
    %v246 = vmul.f32 %v245, 0.6931472
    %v247 = vlog2.pop %v216
    %v248 = vmul.f32 %v247, 0.6931472
    %v249 = vsel %vm153, %v137, %v218
    %v250 = vsel %vm154, %v138, %v220
    %v251 = vsel %vm155, %v139, %v222
    %v252 = vsel %vm156, %v140, %v224
    %v253 = vsel %vm157, %v141, %v226
    %v254 = vsel %vm158, %v142, %v228
    %v255 = vsel %vm159, %v143, %v230
    %v256 = vsel %vm160, %v144, %v232
    %v257 = vsel %vm161, %v145, %v234
    %v258 = vsel %vm162, %v146, %v236
    %v259 = vsel %vm163, %v147, %v238
    %v260 = vsel %vm164, %v148, %v240
    %v261 = vsel %vm165, %v149, %v242
    %v262 = vsel %vm166, %v150, %v244
    %v263 = vsel %vm167, %v151, %v246
    %v264 = vsel %vm168, %v152, %v248
    %v265 = vld [vmem:[#allocation11] sm:$0xff]
    %v266 = vld [vmem:[#allocation11 + $0x8] sm:$0xff]
    %v267 = vld [vmem:[#allocation11 + $0x10] sm:$0xff]
    %v268 = vld [vmem:[#allocation11 + $0x18] sm:$0xff]
    %v269 = vld [vmem:[#allocation11 + $0x20] sm:$0xff]
    %v270 = vld [vmem:[#allocation11 + $0x28] sm:$0xff]
    %v271 = vld [vmem:[#allocation11 + $0x30] sm:$0xff]
    %v272 = vld [vmem:[#allocation11 + $0x38] sm:$0xff]
    %v273 = vld [vmem:[#allocation11 + $0x40] sm:$0xff]
    %v274 = vld [vmem:[#allocation11 + $0x48] sm:$0xff]
    %v275 = vld [vmem:[#allocation11 + $0x50] sm:$0xff]
    %v276 = vld [vmem:[#allocation11 + $0x58] sm:$0xff]
    %v277 = vld [vmem:[#allocation11 + $0x60] sm:$0xff]
    %v278 = vld [vmem:[#allocation11 + $0x68] sm:$0xff]
    %v279 = vld [vmem:[#allocation11 + $0x70] sm:$0xff]
    %v280 = vld [vmem:[#allocation11 + $0x78] sm:$0xff]
    %v281 = vmul.f32 %v249, %v265
    %v282 = vmul.f32 %v250, %v266
    %v283 = vmul.f32 %v251, %v267
    %v284 = vmul.f32 %v252, %v268
    %v285 = vmul.f32 %v253, %v269
    %v286 = vmul.f32 %v254, %v270
    %v287 = vmul.f32 %v255, %v271
    %v288 = vmul.f32 %v256, %v272
    %v289 = vmul.f32 %v257, %v273
    %v290 = vmul.f32 %v258, %v274
    %v291 = vmul.f32 %v259, %v275
    %v292 = vmul.f32 %v260, %v276
    %v293 = vmul.f32 %v261, %v277
    %v294 = vmul.f32 %v262, %v278
    %v295 = vmul.f32 %v263, %v279
    %v296 = vmul.f32 %v264, %v280
    %v297 = vadd.f32 %v121, %v281
    %v298 = vadd.f32 %v122, %v282
    %v299 = vadd.f32 %v123, %v283
    %v300 = vadd.f32 %v124, %v284
    %v301 = vadd.f32 %v125, %v285
    %v302 = vadd.f32 %v126, %v286
    %v303 = vadd.f32 %v127, %v287
    %v304 = vadd.f32 %v128, %v288
    %v305 = vadd.f32 %v129, %v289
    %v306 = vadd.f32 %v130, %v290
    %v307 = vadd.f32 %v131, %v291
    %v308 = vadd.f32 %v132, %v292
    %v309 = vadd.f32 %v133, %v293
    %v310 = vadd.f32 %v134, %v294
    %v311 = vadd.f32 %v135, %v295
    %v312 = vadd.f32 %v136, %v296
    %v313 = vld [vmem:[#allocation2] sm:$0xff]
    %v314 = vld [vmem:[#allocation5] sm:$0xff]
    %315 = vmatprep.subr.mxu0 0.0
    %316 = vmatpush1.msra.mxu0 %v312
    %317 = vmatprep.subr.mxu0 0.0
    %318 = vmatpush1.msra.mxu0 %v311
    %319 = vmatprep.subr.mxu0 0.0
    %320 = vmatpush1.msra.mxu0 %v310
    %321 = vmatprep.subr.mxu0 0.0
    %322 = vmatpush1.msra.mxu0 %v309
    %323 = vmatprep.subr.mxu0 0.0
    %324 = vmatpush1.msra.mxu0 %v308
    %325 = vmatprep.subr.mxu0 0.0
    %326 = vmatpush1.msra.mxu0 %v307
    %327 = vmatprep.subr.mxu0 0.0
    %328 = vmatpush1.msra.mxu0 %v306
    %329 = vmatprep.subr.mxu0 0.0
    %330 = vmatpush1.msra.mxu0 %v305
    %331 = vmatprep.subr.mxu0 0.0
    %332 = vmatpush1.msra.mxu0 %v304
    %333 = vmatprep.subr.mxu0 0.0
    %334 = vmatpush1.msra.mxu0 %v303
    %335 = vmatprep.subr.mxu0 0.0
    %336 = vmatpush1.msra.mxu0 %v302
    %337 = vmatprep.subr.mxu0 0.0
    %338 = vmatpush1.msra.mxu0 %v301
    %339 = vmatprep.subr.mxu0 0.0
    %340 = vmatpush1.msra.mxu0 %v300
    %341 = vmatprep.subr.mxu0 0.0
    %342 = vmatpush1.msra.mxu0 %v299
    %343 = vmatprep.subr.mxu0 0.0
    %344 = vmatpush1.msra.mxu0 %v298
    %345 = vmatprep.subr.mxu0 0.0
    %346 = vmatpush1.msra.mxu0 %v297
    %347 = vmatprep.subr.mxu0 0.0
    %348 = vmatpush2.msra.mxu0 0.0
    %349 = vmatprep.subr.mxu0 0.0
    %350 = vmatpush2.msra.mxu0 0.0
    %351 = vmatprep.subr.mxu0 0.0
    %352 = vmatpush2.msra.mxu0 0.0
    %353 = vmatprep.subr.mxu0 0.0
    %354 = vmatpush2.msra.mxu0 0.0
    %355 = vmatprep.subr.mxu0 0.0
    %356 = vmatpush2.msra.mxu0 0.0
    %357 = vmatprep.subr.mxu0 0.0
    %358 = vmatpush2.msra.mxu0 0.0
    %359 = vmatprep.subr.mxu0 0.0
    %360 = vmatpush2.msra.mxu0 0.0
    %361 = vmatprep.subr.mxu0 0.0
    %362 = vmatpush2.msra.mxu0 0.0
    %363 = vmatprep.subr.mxu0 0.0
    %364 = vmatpush2.msra.mxu0 0.0
    %365 = vmatprep.subr.mxu0 0.0
    %366 = vmatpush2.msra.mxu0 0.0
    %367 = vmatprep.subr.mxu0 0.0
    %368 = vmatpush2.msra.mxu0 0.0
    %369 = vmatprep.subr.mxu0 0.0
    %370 = vmatpush2.msra.mxu0 0.0
    %371 = vmatprep.subr.mxu0 0.0
    %372 = vmatpush2.msra.mxu0 0.0
    %373 = vmatprep.subr.mxu0 0.0
    %374 = vmatpush2.msra.mxu0 0.0
    %375 = vmatprep.subr.mxu0 0.0
    %376 = vmatpush2.msra.mxu0 0.0
    %377 = vmatprep.subr.mxu0 0.0
    %378 = vmatpush2.msra.mxu0 0.0
    %379 = vmatprep.mubr.f32.mxu0 0.0
    %380 = vmatmul.mubr.f32.gmra.mxu0 %v314
    %v381 = vpop.f32.mrf.mxu0
    %v382 = vadd.f32 0.0, %v381
    %v383 = vpop.f32.mrf.mxu0
    %384 = vdwg.mxu0
    %v385 = vadd.f32 %v313, %v382
    %386 = vst [vmem:[#allocation2] sm:$0xff] %v385
    %v387 = vsub.f32 -0.9189385, %v137
    %v388 = vsub.f32 -0.9189385, %v138
    %v389 = vsub.f32 -0.9189385, %v139
    %v390 = vsub.f32 -0.9189385, %v140
    %v391 = vsub.f32 -0.9189385, %v141
    %v392 = vsub.f32 -0.9189385, %v142
    %v393 = vsub.f32 -0.9189385, %v143
    %v394 = vsub.f32 -0.9189385, %v144
    %v395 = vsub.f32 -0.9189385, %v145
    %v396 = vsub.f32 -0.9189385, %v146
    %v397 = vsub.f32 -0.9189385, %v147
    %v398 = vsub.f32 -0.9189385, %v148
    %v399 = vsub.f32 -0.9189385, %v149
    %v400 = vsub.f32 -0.9189385, %v150
    %v401 = vsub.f32 -0.9189385, %v151
    %v402 = vsub.f32 -0.9189385, %v152
    %v403 = vmul.f32 %v281, %v281
    %v404 = vmul.f32 %v282, %v282
    %v405 = vmul.f32 %v283, %v283
    %v406 = vmul.f32 %v284, %v284
    %v407 = vmul.f32 %v285, %v285
    %v408 = vmul.f32 %v286, %v286
    %v409 = vmul.f32 %v287, %v287
    %v410 = vmul.f32 %v288, %v288
    %v411 = vmul.f32 %v289, %v289
    %v412 = vmul.f32 %v290, %v290
    %v413 = vmul.f32 %v291, %v291
    %v414 = vmul.f32 %v292, %v292
    %v415 = vmul.f32 %v293, %v293
    %v416 = vmul.f32 %v294, %v294
    %v417 = vmul.f32 %v295, %v295
    %v418 = vmul.f32 %v296, %v296
    %v419 = vmul.f32 %v137, -2.0
    %v420 = vmul.f32 %v138, -2.0
    %v421 = vmul.f32 %v139, -2.0
    %v422 = vmul.f32 %v140, -2.0
    %v423 = vmul.f32 %v141, -2.0
    %v424 = vmul.f32 %v142, -2.0
    %v425 = vmul.f32 %v143, -2.0
    %v426 = vmul.f32 %v144, -2.0
    %v427 = vmul.f32 %v145, -2.0
    %v428 = vmul.f32 %v146, -2.0
    %v429 = vmul.f32 %v147, -2.0
    %v430 = vmul.f32 %v148, -2.0
    %v431 = vmul.f32 %v149, -2.0
    %v432 = vmul.f32 %v150, -2.0
    %v433 = vmul.f32 %v151, -2.0
    %v434 = vmul.f32 %v152, -2.0
    %v435 = vmul.f32 %v419, 1.442695
    %v436 = vpow.pop %v435
    %v437 = vmul.f32 %v420, 1.442695
    %v438 = vpow.pop %v437
    %v439 = vmul.f32 %v421, 1.442695
    %v440 = vpow.pop %v439
    %v441 = vmul.f32 %v422, 1.442695
    %v442 = vpow.pop %v441
    %v443 = vmul.f32 %v423, 1.442695
    %v444 = vpow.pop %v443
    %v445 = vmul.f32 %v424, 1.442695
    %v446 = vpow.pop %v445
    %v447 = vmul.f32 %v425, 1.442695
    %v448 = vpow.pop %v447
    %v449 = vmul.f32 %v426, 1.442695
    %v450 = vpow.pop %v449
    %v451 = vmul.f32 %v427, 1.442695
    %v452 = vpow.pop %v451
    %v453 = vmul.f32 %v428, 1.442695
    %v454 = vpow.pop %v453
    %v455 = vmul.f32 %v429, 1.442695
    %v456 = vpow.pop %v455
    %v457 = vmul.f32 %v430, 1.442695
    %v458 = vpow.pop %v457
    %v459 = vmul.f32 %v431, 1.442695
    %v460 = vpow.pop %v459
    %v461 = vmul.f32 %v432, 1.442695
    %v462 = vpow.pop %v461
    %v463 = vmul.f32 %v433, 1.442695
    %v464 = vpow.pop %v463
    %v465 = vmul.f32 %v434, 1.442695
    %v466 = vpow.pop %v465
    %v467 = vmul.f32 %v436, 0.5
    %v468 = vmul.f32 %v438, 0.5
    %v469 = vmul.f32 %v440, 0.5
    %v470 = vmul.f32 %v442, 0.5
    %v471 = vmul.f32 %v444, 0.5
    %v472 = vmul.f32 %v446, 0.5
    %v473 = vmul.f32 %v448, 0.5
    %v474 = vmul.f32 %v450, 0.5
    %v475 = vmul.f32 %v452, 0.5
    %v476 = vmul.f32 %v454, 0.5
    %v477 = vmul.f32 %v456, 0.5
    %v478 = vmul.f32 %v458, 0.5
    %v479 = vmul.f32 %v460, 0.5
    %v480 = vmul.f32 %v462, 0.5
    %v481 = vmul.f32 %v464, 0.5
    %v482 = vmul.f32 %v466, 0.5
    %v483 = vmul.f32 %v403, %v467
    %v484 = vmul.f32 %v404, %v468
    %v485 = vmul.f32 %v405, %v469
    %v486 = vmul.f32 %v406, %v470
    %v487 = vmul.f32 %v407, %v471
    %v488 = vmul.f32 %v408, %v472
    %v489 = vmul.f32 %v409, %v473
    %v490 = vmul.f32 %v410, %v474
    %v491 = vmul.f32 %v411, %v475
    %v492 = vmul.f32 %v412, %v476
    %v493 = vmul.f32 %v413, %v477
    %v494 = vmul.f32 %v414, %v478
    %v495 = vmul.f32 %v415, %v479
    %v496 = vmul.f32 %v416, %v480
    %v497 = vmul.f32 %v417, %v481
    %v498 = vmul.f32 %v418, %v482
    %v499 = vsub.f32 %v387, %v483
    %v500 = vsub.f32 %v388, %v484
    %v501 = vsub.f32 %v389, %v485
    %v502 = vsub.f32 %v390, %v486
    %v503 = vsub.f32 %v391, %v487
    %v504 = vsub.f32 %v392, %v488
    %v505 = vsub.f32 %v393, %v489
    %v506 = vsub.f32 %v394, %v490
    %v507 = vsub.f32 %v395, %v491
    %v508 = vsub.f32 %v396, %v492
    %v509 = vsub.f32 %v397, %v493
    %v510 = vsub.f32 %v398, %v494
    %v511 = vsub.f32 %v399, %v495
    %v512 = vsub.f32 %v400, %v496
    %v513 = vsub.f32 %v401, %v497
    %v514 = vsub.f32 %v402, %v498
    %v515 = vld [vmem:[#allocation3] sm:$0xff]
    %v516 = vld [vmem:[#allocation3 + $0x8] sm:$0xff]
    %v517 = vld [vmem:[#allocation3 + $0x10] sm:$0xff]
    %v518 = vld [vmem:[#allocation3 + $0x18] sm:$0xff]
    %v519 = vld [vmem:[#allocation3 + $0x20] sm:$0xff]
    %v520 = vld [vmem:[#allocation3 + $0x28] sm:$0xff]
    %v521 = vld [vmem:[#allocation3 + $0x30] sm:$0xff]
    %v522 = vld [vmem:[#allocation3 + $0x38] sm:$0xff]
    %v523 = vld [vmem:[#allocation3 + $0x40] sm:$0xff]
    %v524 = vld [vmem:[#allocation3 + $0x48] sm:$0xff]
    %v525 = vld [vmem:[#allocation3 + $0x50] sm:$0xff]
    %v526 = vld [vmem:[#allocation3 + $0x58] sm:$0xff]
    %v527 = vld [vmem:[#allocation3 + $0x60] sm:$0xff]
    %v528 = vld [vmem:[#allocation3 + $0x68] sm:$0xff]
    %v529 = vld [vmem:[#allocation3 + $0x70] sm:$0xff]
    %v530 = vld [vmem:[#allocation3 + $0x78] sm:$0xff]
    %v531 = vadd.f32 %v515, %v499
    %v532 = vadd.f32 %v516, %v500
    %v533 = vadd.f32 %v517, %v501
    %v534 = vadd.f32 %v518, %v502
    %v535 = vadd.f32 %v519, %v503
    %v536 = vadd.f32 %v520, %v504
    %v537 = vadd.f32 %v521, %v505
    %v538 = vadd.f32 %v522, %v506
    %v539 = vadd.f32 %v523, %v507
    %v540 = vadd.f32 %v524, %v508
    %v541 = vadd.f32 %v525, %v509
    %v542 = vadd.f32 %v526, %v510
    %v543 = vadd.f32 %v527, %v511
    %v544 = vadd.f32 %v528, %v512
    %v545 = vadd.f32 %v529, %v513
    %v546 = vadd.f32 %v530, %v514
    %547 = vst [vmem:[#allocation3] sm:$0xff] %v531
    %548 = vst [vmem:[#allocation3 + $0x8] sm:$0xff] %v532
    %549 = vst [vmem:[#allocation3 + $0x10] sm:$0xff] %v533
    %550 = vst [vmem:[#allocation3 + $0x18] sm:$0xff] %v534
    %551 = vst [vmem:[#allocation3 + $0x20] sm:$0xff] %v535
    %552 = vst [vmem:[#allocation3 + $0x28] sm:$0xff] %v536
    %553 = vst [vmem:[#allocation3 + $0x30] sm:$0xff] %v537
    %554 = vst [vmem:[#allocation3 + $0x38] sm:$0xff] %v538
    %555 = vst [vmem:[#allocation3 + $0x40] sm:$0xff] %v539
    %556 = vst [vmem:[#allocation3 + $0x48] sm:$0xff] %v540
    %557 = vst [vmem:[#allocation3 + $0x50] sm:$0xff] %v541
    %558 = vst [vmem:[#allocation3 + $0x58] sm:$0xff] %v542
    %559 = vst [vmem:[#allocation3 + $0x60] sm:$0xff] %v543
    %560 = vst [vmem:[#allocation3 + $0x68] sm:$0xff] %v544
    %561 = vst [vmem:[#allocation3 + $0x70] sm:$0xff] %v545
    %562 = vst [vmem:[#allocation3 + $0x78] sm:$0xff] %v546
    %v563 = vmul.f32 %v297, %v297
    %v564 = vmul.f32 %v298, %v298
    %v565 = vmul.f32 %v299, %v299
    %v566 = vmul.f32 %v300, %v300
    %v567 = vmul.f32 %v301, %v301
    %v568 = vmul.f32 %v302, %v302
    %v569 = vmul.f32 %v303, %v303
    %v570 = vmul.f32 %v304, %v304
    %v571 = vmul.f32 %v305, %v305
    %v572 = vmul.f32 %v306, %v306
    %v573 = vmul.f32 %v307, %v307
    %v574 = vmul.f32 %v308, %v308
    %v575 = vmul.f32 %v309, %v309
    %v576 = vmul.f32 %v310, %v310
    %v577 = vmul.f32 %v311, %v311
    %v578 = vmul.f32 %v312, %v312
    %v579 = vsub.f32 0.0, %v563
    %v580 = vsub.f32 0.0, %v564
    %v581 = vsub.f32 0.0, %v565
    %v582 = vsub.f32 0.0, %v566
    %v583 = vsub.f32 0.0, %v567
    %v584 = vsub.f32 0.0, %v568
    %v585 = vsub.f32 0.0, %v569
    %v586 = vsub.f32 0.0, %v570
    %v587 = vsub.f32 0.0, %v571
    %v588 = vsub.f32 0.0, %v572
    %v589 = vsub.f32 0.0, %v573
    %v590 = vsub.f32 0.0, %v574
    %v591 = vsub.f32 0.0, %v575
    %v592 = vsub.f32 0.0, %v576
    %v593 = vsub.f32 0.0, %v577
    %v594 = vsub.f32 0.0, %v578
    %v595 = vmul.f32 %v579, 617283.94
    %v596 = vmul.f32 %v580, 617283.94
    %v597 = vmul.f32 %v581, 617283.94
    %v598 = vmul.f32 %v582, 617283.94
    %v599 = vmul.f32 %v583, 617283.94
    %v600 = vmul.f32 %v584, 617283.94
    %v601 = vmul.f32 %v585, 617283.94
    %v602 = vmul.f32 %v586, 617283.94
    %v603 = vmul.f32 %v587, 617283.94
    %v604 = vmul.f32 %v588, 617283.94
    %v605 = vmul.f32 %v589, 617283.94
    %v606 = vmul.f32 %v590, 617283.94
    %v607 = vmul.f32 %v591, 617283.94
    %v608 = vmul.f32 %v592, 617283.94
    %v609 = vmul.f32 %v593, 617283.94
    %v610 = vmul.f32 %v594, 617283.94
    %v611 = vmul.f32 %v595, 1.442695
    %v612 = vpow.pop %v611
    %v613 = vmul.f32 %v596, 1.442695
    %v614 = vpow.pop %v613
    %v615 = vmul.f32 %v597, 1.442695
    %v616 = vpow.pop %v615
    %v617 = vmul.f32 %v598, 1.442695
    %v618 = vpow.pop %v617
    %v619 = vmul.f32 %v599, 1.442695
    %v620 = vpow.pop %v619
    %v621 = vmul.f32 %v600, 1.442695
    %v622 = vpow.pop %v621
    %v623 = vmul.f32 %v601, 1.442695
    %v624 = vpow.pop %v623
    %v625 = vmul.f32 %v602, 1.442695
    %v626 = vpow.pop %v625
    %v627 = vmul.f32 %v603, 1.442695
    %v628 = vpow.pop %v627
    %v629 = vmul.f32 %v604, 1.442695
    %v630 = vpow.pop %v629
    %v631 = vmul.f32 %v605, 1.442695
    %v632 = vpow.pop %v631
    %v633 = vmul.f32 %v606, 1.442695
    %v634 = vpow.pop %v633
    %v635 = vmul.f32 %v607, 1.442695
    %v636 = vpow.pop %v635
    %v637 = vmul.f32 %v608, 1.442695
    %v638 = vpow.pop %v637
    %v639 = vmul.f32 %v609, 1.442695
    %v640 = vpow.pop %v639
    %v641 = vmul.f32 %v610, 1.442695
    %v642 = vpow.pop %v641
    %v643 = vmul.f32 %v612, 221.6346
    %v644 = vmul.f32 %v614, 221.6346
    %v645 = vmul.f32 %v616, 221.6346
    %v646 = vmul.f32 %v618, 221.6346
    %v647 = vmul.f32 %v620, 221.6346
    %v648 = vmul.f32 %v622, 221.6346
    %v649 = vmul.f32 %v624, 221.6346
    %v650 = vmul.f32 %v626, 221.6346
    %v651 = vmul.f32 %v628, 221.6346
    %v652 = vmul.f32 %v630, 221.6346
    %v653 = vmul.f32 %v632, 221.6346
    %v654 = vmul.f32 %v634, 221.6346
    %v655 = vmul.f32 %v636, 221.6346
    %v656 = vmul.f32 %v638, 221.6346
    %v657 = vmul.f32 %v640, 221.6346
    %v658 = vmul.f32 %v642, 221.6346
    %v659 = vmul.f32 %v579, 0.5
    %v660 = vmul.f32 %v580, 0.5
    %v661 = vmul.f32 %v581, 0.5
    %v662 = vmul.f32 %v582, 0.5
    %v663 = vmul.f32 %v583, 0.5
    %v664 = vmul.f32 %v584, 0.5
    %v665 = vmul.f32 %v585, 0.5
    %v666 = vmul.f32 %v586, 0.5
    %v667 = vmul.f32 %v587, 0.5
    %v668 = vmul.f32 %v588, 0.5
    %v669 = vmul.f32 %v589, 0.5
    %v670 = vmul.f32 %v590, 0.5
    %v671 = vmul.f32 %v591, 0.5
    %v672 = vmul.f32 %v592, 0.5
    %v673 = vmul.f32 %v593, 0.5
    %v674 = vmul.f32 %v594, 0.5
    %v675 = vmul.f32 %v659, 1.442695
    %v676 = vpow.pop %v675
    %v677 = vmul.f32 %v660, 1.442695
    %v678 = vpow.pop %v677
    %v679 = vmul.f32 %v661, 1.442695
    %v680 = vpow.pop %v679
    %v681 = vmul.f32 %v662, 1.442695
    %v682 = vpow.pop %v681
    %v683 = vmul.f32 %v663, 1.442695
    %v684 = vpow.pop %v683
    %v685 = vmul.f32 %v664, 1.442695
    %v686 = vpow.pop %v685
    %v687 = vmul.f32 %v665, 1.442695
    %v688 = vpow.pop %v687
    %v689 = vmul.f32 %v666, 1.442695
    %v690 = vpow.pop %v689
    %v691 = vmul.f32 %v667, 1.442695
    %v692 = vpow.pop %v691
    %v693 = vmul.f32 %v668, 1.442695
    %v694 = vpow.pop %v693
    %v695 = vmul.f32 %v669, 1.442695
    %v696 = vpow.pop %v695
    %v697 = vmul.f32 %v670, 1.442695
    %v698 = vpow.pop %v697
    %v699 = vmul.f32 %v671, 1.442695
    %v700 = vpow.pop %v699
    %v701 = vmul.f32 %v672, 1.442695
    %v702 = vpow.pop %v701
    %v703 = vmul.f32 %v673, 1.442695
    %v704 = vpow.pop %v703
    %v705 = vmul.f32 %v674, 1.442695
    %v706 = vpow.pop %v705
    %v707 = vmul.f32 %v676, 0.19947115
    %v708 = vmul.f32 %v678, 0.19947115
    %v709 = vmul.f32 %v680, 0.19947115
    %v710 = vmul.f32 %v682, 0.19947115
    %v711 = vmul.f32 %v684, 0.19947115
    %v712 = vmul.f32 %v686, 0.19947115
    %v713 = vmul.f32 %v688, 0.19947115
    %v714 = vmul.f32 %v690, 0.19947115
    %v715 = vmul.f32 %v692, 0.19947115
    %v716 = vmul.f32 %v694, 0.19947115
    %v717 = vmul.f32 %v696, 0.19947115
    %v718 = vmul.f32 %v698, 0.19947115
    %v719 = vmul.f32 %v700, 0.19947115
    %v720 = vmul.f32 %v702, 0.19947115
    %v721 = vmul.f32 %v704, 0.19947115
    %v722 = vmul.f32 %v706, 0.19947115
    %v723 = vadd.f32 %v643, %v707
    %v724 = vadd.f32 %v644, %v708
    %v725 = vadd.f32 %v645, %v709
    %v726 = vadd.f32 %v646, %v710
    %v727 = vadd.f32 %v647, %v711
    %v728 = vadd.f32 %v648, %v712
    %v729 = vadd.f32 %v649, %v713
    %v730 = vadd.f32 %v650, %v714
    %v731 = vadd.f32 %v651, %v715
    %v732 = vadd.f32 %v652, %v716
    %v733 = vadd.f32 %v653, %v717
    %v734 = vadd.f32 %v654, %v718
    %v735 = vadd.f32 %v655, %v719
    %v736 = vadd.f32 %v656, %v720
    %v737 = vadd.f32 %v657, %v721
    %v738 = vadd.f32 %v658, %v722
    %v739 = vlog2.pop %v723
    %v740 = vmul.f32 %v739, 0.6931472
    %v741 = vlog2.pop %v724
    %v742 = vmul.f32 %v741, 0.6931472
    %v743 = vlog2.pop %v725
    %v744 = vmul.f32 %v743, 0.6931472
    %v745 = vlog2.pop %v726
    %v746 = vmul.f32 %v745, 0.6931472
    %v747 = vlog2.pop %v727
    %v748 = vmul.f32 %v747, 0.6931472
    %v749 = vlog2.pop %v728
    %v750 = vmul.f32 %v749, 0.6931472
    %v751 = vlog2.pop %v729
    %v752 = vmul.f32 %v751, 0.6931472
    %v753 = vlog2.pop %v730
    %v754 = vmul.f32 %v753, 0.6931472
    %v755 = vlog2.pop %v731
    %v756 = vmul.f32 %v755, 0.6931472
    %v757 = vlog2.pop %v732
    %v758 = vmul.f32 %v757, 0.6931472
    %v759 = vlog2.pop %v733
    %v760 = vmul.f32 %v759, 0.6931472
    %v761 = vlog2.pop %v734
    %v762 = vmul.f32 %v761, 0.6931472
    %v763 = vlog2.pop %v735
    %v764 = vmul.f32 %v763, 0.6931472
    %v765 = vlog2.pop %v736
    %v766 = vmul.f32 %v765, 0.6931472
    %v767 = vlog2.pop %v737
    %v768 = vmul.f32 %v767, 0.6931472
    %v769 = vlog2.pop %v738
    %v770 = vmul.f32 %v769, 0.6931472
    %v771 = vld [vmem:[#allocation4] sm:$0xff]
    %v772 = vld [vmem:[#allocation4 + $0x8] sm:$0xff]
    %v773 = vld [vmem:[#allocation4 + $0x10] sm:$0xff]
    %v774 = vld [vmem:[#allocation4 + $0x18] sm:$0xff]
    %v775 = vld [vmem:[#allocation4 + $0x20] sm:$0xff]
    %v776 = vld [vmem:[#allocation4 + $0x28] sm:$0xff]
    %v777 = vld [vmem:[#allocation4 + $0x30] sm:$0xff]
    %v778 = vld [vmem:[#allocation4 + $0x38] sm:$0xff]
    %v779 = vld [vmem:[#allocation4 + $0x40] sm:$0xff]
    %v780 = vld [vmem:[#allocation4 + $0x48] sm:$0xff]
    %v781 = vld [vmem:[#allocation4 + $0x50] sm:$0xff]
    %v782 = vld [vmem:[#allocation4 + $0x58] sm:$0xff]
    %v783 = vld [vmem:[#allocation4 + $0x60] sm:$0xff]
    %v784 = vld [vmem:[#allocation4 + $0x68] sm:$0xff]
    %v785 = vld [vmem:[#allocation4 + $0x70] sm:$0xff]
    %v786 = vld [vmem:[#allocation4 + $0x78] sm:$0xff]
    %v787 = vadd.f32 %v771, %v740
    %v788 = vadd.f32 %v772, %v742
    %v789 = vadd.f32 %v773, %v744
    %v790 = vadd.f32 %v774, %v746
    %v791 = vadd.f32 %v775, %v748
    %v792 = vadd.f32 %v776, %v750
    %v793 = vadd.f32 %v777, %v752
    %v794 = vadd.f32 %v778, %v754
    %v795 = vadd.f32 %v779, %v756
    %v796 = vadd.f32 %v780, %v758
    %v797 = vadd.f32 %v781, %v760
    %v798 = vadd.f32 %v782, %v762
    %v799 = vadd.f32 %v783, %v764
    %v800 = vadd.f32 %v784, %v766
    %v801 = vadd.f32 %v785, %v768
    %v802 = vadd.f32 %v786, %v770
    %803 = vst [vmem:[#allocation4] sm:$0xff] %v787
    %804 = vst [vmem:[#allocation4 + $0x8] sm:$0xff] %v788
    %805 = vst [vmem:[#allocation4 + $0x10] sm:$0xff] %v789
    %806 = vst [vmem:[#allocation4 + $0x18] sm:$0xff] %v790
    %807 = vst [vmem:[#allocation4 + $0x20] sm:$0xff] %v791
    %808 = vst [vmem:[#allocation4 + $0x28] sm:$0xff] %v792
    %809 = vst [vmem:[#allocation4 + $0x30] sm:$0xff] %v793
    %810 = vst [vmem:[#allocation4 + $0x38] sm:$0xff] %v794
    %811 = vst [vmem:[#allocation4 + $0x40] sm:$0xff] %v795
    %812 = vst [vmem:[#allocation4 + $0x48] sm:$0xff] %v796
    %813 = vst [vmem:[#allocation4 + $0x50] sm:$0xff] %v797
    %814 = vst [vmem:[#allocation4 + $0x58] sm:$0xff] %v798
    %815 = vst [vmem:[#allocation4 + $0x60] sm:$0xff] %v799
    %816 = vst [vmem:[#allocation4 + $0x68] sm:$0xff] %v800
    %817 = vst [vmem:[#allocation4 + $0x70] sm:$0xff] %v801
    %818 = vst [vmem:[#allocation4 + $0x78] sm:$0xff] %v802
    // Predicated region
    $region50: #{tpu_custom_call.1} parent=1 // pred_check
      %p819 = pneg %p84
    $region51: #{tpu_custom_call.1} parent=1 // pred_check_branch
      %821 = sbr.rel (%p819) target = $region53
    $region52: #{tpu_custom_call.1} parent=1 // pred_region
      %v822 = vld [vmem:[%s4] sm:$0x1]
      %v823 = vld [vmem:[%s5] sm:$0x1]
      %vm824 = vcmp.gt.f32.partialorder %v823, 20.0
      %v825 = vmul.f32 %v823, 1.442695
      %v826 = vpow.pop %v825
      %v827 = vadd.f32 %v826, 1.0
      %v828 = vlog2.pop %v827
      %v829 = vmul.f32 %v828, 0.6931472
      %v830 = vsel %vm824, %v823, %v829
      %v831 = vld [vmem:[%s6] sm:$0x1]
      %v832 = vmul.f32 %v830, %v831
      %v833 = vadd.f32 %v822, %v832
      %v834 = vld [vmem:[#allocation2] sm:$0xff]
      %v836 = vlaneseq
      %v837 = vshrl.u32 %v836, 7
      %v838 = vsub.s32 0, %v837
      %v839 = vrot.slane %v833, %v838
      %v841 = vadd.f32 %v834, %v839
      %842 = vst [vmem:[#allocation13] sm:$0xff] %v841
      %v843 = vsub.f32 -0.9189385, %v823
      %v844 = vmul.f32 %v832, %v832
      %v845 = vmul.f32 %v823, -2.0
      %v846 = vmul.f32 %v845, 1.442695
      %v847 = vpow.pop %v846
      %v848 = vmul.f32 %v847, 0.5
      %v849 = vmul.f32 %v844, %v848
      %v850 = vsub.f32 %v843, %v849
      %v851 = vmul.f32 %v833, %v833
      %v852 = vsub.f32 0.0, %v851
      %v853 = vmul.f32 %v852, 617283.94
      %v854 = vmul.f32 %v853, 1.442695
      %v855 = vpow.pop %v854
      %v856 = vmul.f32 %v855, 221.6346
      %v857 = vmul.f32 %v852, 0.5
      %v858 = vmul.f32 %v857, 1.442695
      %v859 = vpow.pop %v858
      %v860 = vmul.f32 %v859, 0.19947115
      %v861 = vadd.f32 %v856, %v860
      %v862 = vlog2.pop %v861
      %v863 = vmul.f32 %v862, 0.6931472
      %v864 = vld [vmem:[#allocation3] sm:$0xff]
      %v865 = vld [vmem:[#allocation3 + $0x8] sm:$0xff]
      %v866 = vld [vmem:[#allocation3 + $0x10] sm:$0xff]
      %v867 = vld [vmem:[#allocation3 + $0x18] sm:$0xff]
      %v868 = vld [vmem:[#allocation3 + $0x20] sm:$0xff]
      %v869 = vld [vmem:[#allocation3 + $0x28] sm:$0xff]
      %v870 = vld [vmem:[#allocation3 + $0x30] sm:$0xff]
      %v871 = vld [vmem:[#allocation3 + $0x38] sm:$0xff]
      %v872 = vld [vmem:[#allocation3 + $0x40] sm:$0xff]
      %v873 = vld [vmem:[#allocation3 + $0x48] sm:$0xff]
      %v874 = vld [vmem:[#allocation3 + $0x50] sm:$0xff]
      %v875 = vld [vmem:[#allocation3 + $0x58] sm:$0xff]
      %v876 = vld [vmem:[#allocation3 + $0x60] sm:$0xff]
      %v877 = vld [vmem:[#allocation3 + $0x68] sm:$0xff]
      %v878 = vld [vmem:[#allocation3 + $0x70] sm:$0xff]
      %v879 = vld [vmem:[#allocation3 + $0x78] sm:$0xff]
      %v880 = vadd.f32 %v864, %v865
      %v881 = vadd.f32 %v880, %v866
      %v882 = vadd.f32 %v881, %v867
      %v883 = vadd.f32 %v882, %v868
      %v884 = vadd.f32 %v883, %v869
      %v885 = vadd.f32 %v884, %v870
      %v886 = vadd.f32 %v885, %v871
      %v887 = vadd.f32 %v886, %v872
      %v888 = vadd.f32 %v887, %v873
      %v889 = vadd.f32 %v888, %v874
      %v890 = vadd.f32 %v889, %v875
      %v891 = vadd.f32 %v890, %v876
      %v892 = vadd.f32 %v891, %v877
      %v893 = vadd.f32 %v892, %v878
      %v894 = vadd.f32 %v893, %v879
      %895 = vadd.xlane.f32.xlu0 %v894
      %v896 = vpop.xlane.xlu0 %895
      %v897 = vrot.slane %v896, 4
      %v898 = vadd.f32 %v896, %v897
      %v899 = vrot.slane %v898, 2
      %v900 = vadd.f32 %v898, %v899
      %v901 = vrot.slane %v900, 1
      %v902 = vadd.f32 %v900, %v901
      %s903 = vtos %v902
      %vm904 = vcmask 1040384
      %v905 = vsel %vm904, %v850, 0.0
      %906 = vadd.xlane.f32.xlu0 %v905
      %v907 = vpop.xlane.xlu0 %906
      %v908 = vrot.slane %v907, 4
      %v909 = vadd.f32 %v907, %v908
      %v910 = vrot.slane %v909, 2
      %v911 = vadd.f32 %v909, %v910
      %v912 = vrot.slane %v911, 1
      %v913 = vadd.f32 %v911, %v912
      %s914 = vtos %v913
      %s915 = sadd.f32 %s903, %s914
      %v916 = vld [vmem:[#allocation4] sm:$0xff]
      %v917 = vld [vmem:[#allocation4 + $0x8] sm:$0xff]
      %v918 = vld [vmem:[#allocation4 + $0x10] sm:$0xff]
      %v919 = vld [vmem:[#allocation4 + $0x18] sm:$0xff]
      %v920 = vld [vmem:[#allocation4 + $0x20] sm:$0xff]
      %v921 = vld [vmem:[#allocation4 + $0x28] sm:$0xff]
      %v922 = vld [vmem:[#allocation4 + $0x30] sm:$0xff]
      %v923 = vld [vmem:[#allocation4 + $0x38] sm:$0xff]
      %v924 = vld [vmem:[#allocation4 + $0x40] sm:$0xff]
      %v925 = vld [vmem:[#allocation4 + $0x48] sm:$0xff]
      %v926 = vld [vmem:[#allocation4 + $0x50] sm:$0xff]
      %v927 = vld [vmem:[#allocation4 + $0x58] sm:$0xff]
      %v928 = vld [vmem:[#allocation4 + $0x60] sm:$0xff]
      %v929 = vld [vmem:[#allocation4 + $0x68] sm:$0xff]
      %v930 = vld [vmem:[#allocation4 + $0x70] sm:$0xff]
      %v931 = vld [vmem:[#allocation4 + $0x78] sm:$0xff]
      %v932 = vadd.f32 %v916, %v917
      %v933 = vadd.f32 %v932, %v918
      %v934 = vadd.f32 %v933, %v919
      %v935 = vadd.f32 %v934, %v920
      %v936 = vadd.f32 %v935, %v921
      %v937 = vadd.f32 %v936, %v922
      %v938 = vadd.f32 %v937, %v923
      %v939 = vadd.f32 %v938, %v924
      %v940 = vadd.f32 %v939, %v925
      %v941 = vadd.f32 %v940, %v926
      %v942 = vadd.f32 %v941, %v927
      %v943 = vadd.f32 %v942, %v928
      %v944 = vadd.f32 %v943, %v929
      %v945 = vadd.f32 %v944, %v930
      %v946 = vadd.f32 %v945, %v931
      %947 = vadd.xlane.f32.xlu0 %v946
      %v948 = vpop.xlane.xlu0 %947
      %v949 = vrot.slane %v948, 4
      %v950 = vadd.f32 %v948, %v949
      %v951 = vrot.slane %v950, 2
      %v952 = vadd.f32 %v950, %v951
      %v953 = vrot.slane %v952, 1
      %v954 = vadd.f32 %v952, %v953
      %s955 = vtos %v954
      %v956 = vsel %vm904, %v863, 0.0
      %957 = vadd.xlane.f32.xlu0 %v956
      %v958 = vpop.xlane.xlu0 %957
      %v959 = vrot.slane %v958, 4
      %v960 = vadd.f32 %v958, %v959
      %v961 = vrot.slane %v960, 2
      %v962 = vadd.f32 %v960, %v961
      %v963 = vrot.slane %v962, 1
      %v964 = vadd.f32 %v962, %v963
      %s965 = vtos %v964
      %s966 = sadd.f32 %s955, %s965
      %v967 = vstv %s915
      %v968 = vadd.f32 %v967, 0.0
      %969 = vst [vmem:[#allocation14] sm:$0x1] %v968
      %v970 = vstv %s966
      %v971 = vadd.f32 %v970, 0.0
      %972 = vst [vmem:[#allocation16] sm:$0x1] %v971
    $region53: #{tpu_custom_call.1} parent=1 // pred_fallthru
      _
    // Predicated region
    $region54: #{tpu_custom_call.1} parent=1 // pred_check
      _
    $region55: #{tpu_custom_call.1} parent=1 // pred_check_branch
      %974 = sbr.rel (0) target = $region57
    $region56: #{tpu_custom_call.1} parent=1 // pred_region
      %s976 = ssub.s32 128, 128
      %977 = vsyncadd [#allocation7], %s976
      %s979 = sshll.u32 [#allocation13], 4
      %s980 = int_to_ptr.vmem [resolvable:$true] %s979
      %982 = dma.vmem_to_hbm [thread:$0]  %s980, 128, %s7, [#allocation7]
    $region57: #{tpu_custom_call.1} parent=1 // pred_fallthru
      _
    // Predicated region
    $region58: #{tpu_custom_call.1} parent=1 // pred_check
      _
    $region59: #{tpu_custom_call.1} parent=1 // pred_check_branch
      %984 = sbr.rel (0) target = $region61
    $region60: #{tpu_custom_call.1} parent=1 // pred_region
      %s986 = ssub.s32 16, 16
      %987 = vsyncadd [#allocation15], %s986
      %s989 = sshll.u32 [#allocation14], 4
      %s990 = int_to_ptr.vmem [resolvable:$true] %s989
      %992 = dma.vmem_to_hbm [thread:$0]  %s990, 16, %s8, [#allocation15]
    $region61: #{tpu_custom_call.1} parent=1 // pred_fallthru
      _
    // Predicated region
    $region62: #{tpu_custom_call.1} parent=1 // pred_check
      _
    $region63: #{tpu_custom_call.1} parent=1 // pred_check_branch
      %994 = sbr.rel (0) target = $region65
    $region64: #{tpu_custom_call.1} parent=1 // pred_region
      %s996 = ssub.s32 16, 16
      %997 = vsyncadd [#allocation15], %s996
      %s999 = sshll.u32 [#allocation16], 4
      %s1000 = int_to_ptr.vmem [resolvable:$true] %s999
      %1002 = dma.vmem_to_hbm [thread:$0]  %s1000, 16, %s9, [#allocation15]
    $region65: #{tpu_custom_call.1} parent=1 // pred_fallthru
      _
    // Predicated region
    $region66: #{tpu_custom_call.1} parent=1 // pred_check
      _
    $region67: #{tpu_custom_call.1} parent=1 // pred_check_branch
      %1004 = sbr.rel (0) target = $region69
    $region68: #{tpu_custom_call.1} parent=1 // pred_region
      %1005 = dma.done [#allocation7], 128
    $region69: #{tpu_custom_call.1} parent=1 // pred_fallthru
      _
    // Predicated region
    $region70: #{tpu_custom_call.1} parent=1 // pred_check
      _
    $region71: #{tpu_custom_call.1} parent=1 // pred_check_branch
      %1007 = sbr.rel (0) target = $region73
    $region72: #{tpu_custom_call.1} parent=1 // pred_region
      %1008 = dma.done [#allocation15], 16
    $region73: #{tpu_custom_call.1} parent=1 // pred_fallthru
      _
    // Predicated region
    $region74: #{tpu_custom_call.1} parent=1 // pred_check
      _
    $region75: #{tpu_custom_call.1} parent=1 // pred_check_branch
      %1010 = sbr.rel (0) target = $region77
    $region76: #{tpu_custom_call.1} parent=1 // pred_region
      %1011 = dma.done [#allocation15], 16
    $region77: #{tpu_custom_call.1} parent=1 // pred_fallthru
      _
    %1012 = vsyncpa [#allocation6], 1
    %1013 = vsyncpa [#allocation9], 1
    %1014 = vsyncpa [#allocation12], 1
    %1015 = vsyncpa [#allocation7], 1
    %1016 = vsyncpa [#allocation15], 1

</llo_original>
